<compile_context>
chip_gen: v7x
topology: tpu7x:2x2x1
jax: 0.10.0
libtpu: 0.0.40
codegen_flags: <defaults>
</compile_context>

<pallas_src>
import functools

import jax
import jax.numpy as jnp
from jax.experimental import pallas as pl
from jax.experimental.pallas import tpu as pltpu


def _scale_loss_kernel(pred_ref, t_ref, out_ref,
                       acc_ce, acc_pt, acc_p, acc_t,
                       *, h, tile_h):
    """Per-scale hot path, one (1, 2, tile_h, w) logits tile per grid step.

    Inputs (VMEM):
      pred_ref : (1, 2, tile_h, w) logits in native dtype (ch0=bg, ch1=fg)
      t_ref    : (1, tile_h, w)    target mask in {0, 1} (bf16)
    Output (SMEM), shape (4,), f32, written once at the last grid step:
      [0] sum of per-pixel cross-entropy   (FocalLoss, gamma=0)
      [1] sum of p_fg * target             (dice intersection)
      [2] sum of p_fg                      (dice denominator term)
      [3] sum of target                    (dice denominator term)
    Scratch: four (tile_h, w) f32 elementwise accumulators.
    """
    n = pl.program_id(0)
    i = pl.program_id(1)
    first = jnp.logical_and(n == 0, i == 0)
    last = jnp.logical_and(n == pl.num_programs(0) - 1,
                           i == pl.num_programs(1) - 1)

    @pl.when(first)
    def _():
        acc_ce[...] = jnp.zeros_like(acc_ce)
        acc_pt[...] = jnp.zeros_like(acc_pt)
        acc_p[...] = jnp.zeros_like(acc_p)
        acc_t[...] = jnp.zeros_like(acc_t)

    # Split channels in-kernel (no strided slice copies in HBM).
    l0 = pred_ref[0, 0].astype(jnp.float32)        # (tile_h, w)
    l1 = pred_ref[0, 1].astype(jnp.float32)
    t = t_ref[0].astype(jnp.float32)

    # Two-class softmax math in terms of d = l1 - l0:
    #   cross-entropy = softplus(d) - t * d
    #   p_fg          = sigmoid(d)
    d = l1 - l0
    e = jnp.exp(-jnp.abs(d))                       # one EUP exp / element
    softplus_d = jnp.maximum(d, 0.0) + jnp.log(1.0 + e)
    ce = softplus_d - t * d
    r = pl.reciprocal(1.0 + e, approx=True)        # EUP approx reciprocal
    p1 = jnp.where(d >= 0.0, r, e * r)             # sigmoid(d)

    if h % tile_h != 0:
        # Mask padded rows of the trailing partial row-tile.
        rows = jax.lax.broadcasted_iota(jnp.int32, t.shape, 0) + i * tile_h
        valid = rows < h
        ce = jnp.where(valid, ce, 0.0)
        p1 = jnp.where(valid, p1, 0.0)
        t = jnp.where(valid, t, 0.0)

    # Elementwise (VPU-only) partial-sum accumulation in the steady state.
    acc_ce[...] += ce
    acc_pt[...] += p1 * t
    acc_p[...] += p1
    acc_t[...] += t

    @pl.when(last)
    def _():
        # Single cross-lane/sublane reduction per scale.
        out_ref[0] = jnp.sum(acc_ce[...])
        out_ref[1] = jnp.sum(acc_pt[...])
        out_ref[2] = jnp.sum(acc_p[...])
        out_ref[3] = jnp.sum(acc_t[...])


def _scale_sums(pred, t_resized, *, tile_h):
    """Run the accumulating reduction kernel for one prediction scale."""
    N, C, h, w = pred.shape
    num_row_tiles = -(-h // tile_h)
    P = N * h * w
    kernel = functools.partial(_scale_loss_kernel, h=h, tile_h=tile_h)

    bytes_accessed = int(pred.size * pred.dtype.itemsize
                         + t_resized.size * t_resized.dtype.itemsize + 16)

    return pl.pallas_call(
        kernel,
        out_shape=jax.ShapeDtypeStruct((4,), jnp.float32),
        grid_spec=pltpu.PrefetchScalarGridSpec(
            num_scalar_prefetch=0,
            grid=(N, num_row_tiles),
            in_specs=[
                pl.BlockSpec((1, 2, tile_h, w), lambda n, i: (n, 0, i, 0)),
                pl.BlockSpec((1, tile_h, w), lambda n, i: (n, i, 0)),
            ],
            out_specs=pl.BlockSpec(memory_space=pltpu.MemorySpace.SMEM),
            scratch_shapes=[pltpu.VMEM((tile_h, w), jnp.float32)] * 4,
        ),
        compiler_params=pltpu.CompilerParams(
            dimension_semantics=("arbitrary", "arbitrary"),
            vmem_limit_bytes=32 * 1024 * 1024,
        ),
        cost_estimate=pl.CostEstimate(
            flops=14 * P, transcendentals=2 * P, bytes_accessed=bytes_accessed),
    )(pred, t_resized)


def _nearest_resize_target(target, h, w):
    """F.interpolate(target[None].float(), size=(h, w))[0]  (mode='nearest')."""
    N, H, W = target.shape
    ri = (jnp.arange(h) * H) // h
    ci = (jnp.arange(w) * W) // w
    t = jnp.take(target, ri, axis=1)
    t = jnp.take(t, ci, axis=2)
    # Narrow dtype for the DMA; values {0, 1} are exact in bf16.
    return t.astype(jnp.bfloat16)


@jax.jit
def contra_hybrid_loss_forward(predictions, target):
    """predictions: list of NCHW logits [N, 2, h_i, w_i]; target: [N, H, W] int."""
    weights = [1.0, 1.0 / 4.0, 1.0 / 8.0]
    smooth = 1.0

    bce_loss = jnp.float32(0.0)
    dice_loss_total = jnp.float32(0.0)

    for idx, pred in enumerate(predictions):
        N, C, h, w = pred.shape
        assert C == 2, "binary (2-class) segmentation logits expected"
        P = N * h * w

        # Row-tile height: full image height when small (no masking needed),
        # otherwise 128-row tiles (multiple of 8) with in-kernel tail masking.
        tile_h = h if h <= 256 else 128

        t = _nearest_resize_target(target, h, w)            # [N, h, w] bf16 {0,1}
        sums = _scale_sums(pred, t, tile_h=tile_h)

        ce_mean = sums[0] / jnp.float32(P)                   # FocalLoss mean
        dice = 1.0 - (2.0 * sums[1] + smooth) / (sums[2] + sums[3] + smooth)

        bce_loss = bce_loss + weights[idx] * ce_mean
        dice_loss_total = dice_loss_total + weights[idx] * dice

    loss = bce_loss + dice_loss_total
    return dice_loss_total, bce_loss, loss


if __name__ == "__main__":
    key = jax.random.PRNGKey(0)
    k1, k2, k3, k4 = jax.random.split(key, 4)

    N, C, H, W = 2, 2, 16, 16
    predictions = [
        jax.random.normal(k1, (N, C, 16, 16), dtype=jnp.float32),
        jax.random.normal(k2, (N, C, 8, 8), dtype=jnp.float32),
        jax.random.normal(k3, (N, C, 4, 4), dtype=jnp.float32),
    ]
    target = (jax.random.uniform(k4, (N, H, W)) > 0.5).astype(jnp.int32)

    dice, bce, total = contra_hybrid_loss_forward(predictions, target)
    jax.block_until_ready((dice, bce, total))
    print("KERNEL_OK")
</pallas_src>

<mosaic_0001>
module attributes {stable_mosaic.version = 11 : i64} {
  func.func @_scale_loss_kernel(%arg0: i32, %arg1: i32, %arg2: memref<1x2x16x16xf32, #tpu.memory_space<vmem>>, %arg3: memref<1x16x16xbf16, #tpu.memory_space<vmem>>, %arg4: memref<4xf32, #tpu.memory_space<smem>>, %arg5: memref<16x16xf32, #tpu.memory_space<vmem>>, %arg6: memref<16x16xf32, #tpu.memory_space<vmem>>, %arg7: memref<16x16xf32, #tpu.memory_space<vmem>>, %arg8: memref<16x16xf32, #tpu.memory_space<vmem>>) attributes {dimension_semantics = [#tpu.dimension_semantics<arbitrary>, #tpu.dimension_semantics<arbitrary>], iteration_bounds = array<i64: 2, 1>, scalar_prefetch = 0 : i64, scratch_operands = 4 : i64, tpu.core_type = #tpu.core_type<tc>, window_params = [{transform_indices = @transform_0, window_bounds = array<i64: 1, 2, 16, 16>}, {transform_indices = @transform_1, window_bounds = array<i64: 1, 16, 16>}, {transform_indices = @transform_2, window_bounds = array<i64: 4>}]} {
    %c0_i32 = arith.constant 0 : i32
    %0 = arith.cmpi eq, %arg0, %c0_i32 : i32
    %c0_i32_0 = arith.constant 0 : i32
    %1 = arith.cmpi eq, %arg1, %c0_i32_0 : i32
    %2 = arith.andi %0, %1 : i1
    %c1_i32 = arith.constant 1 : i32
    %3 = arith.cmpi eq, %arg0, %c1_i32 : i32
    %c0_i32_1 = arith.constant 0 : i32
    %4 = arith.cmpi eq, %arg1, %c0_i32_1 : i32
    %5 = arith.andi %3, %4 : i1
    %6 = arith.extui %2 : i1 to i32
    %c0_i32_2 = arith.constant 0 : i32
    %7 = arith.cmpi ne, %6, %c0_i32_2 : i32
    scf.if %7 {
      %cst_33 = arith.constant 0.000000e+00 : f32
      %50 = vector.broadcast %cst_33 : f32 to vector<16x16xf32>
      %c0_34 = arith.constant 0 : index
      %c0_35 = arith.constant 0 : index
      %51 = vector.load %arg5[%c0_34, %c0_35] : memref<16x16xf32, #tpu.memory_space<vmem>>, vector<16x16xf32>
      tpu.vector_store %arg5[%c0_34, %c0_35], %50 {strides = array<i32>} : memref<16x16xf32, #tpu.memory_space<vmem>>, vector<16x16xf32>,
      %cst_36 = arith.constant 0.000000e+00 : f32
      %52 = vector.broadcast %cst_36 : f32 to vector<16x16xf32>
      %c0_37 = arith.constant 0 : index
      %c0_38 = arith.constant 0 : index
      %53 = vector.load %arg6[%c0_37, %c0_38] : memref<16x16xf32, #tpu.memory_space<vmem>>, vector<16x16xf32>
      tpu.vector_store %arg6[%c0_37, %c0_38], %52 {strides = array<i32>} : memref<16x16xf32, #tpu.memory_space<vmem>>, vector<16x16xf32>,
      %cst_39 = arith.constant 0.000000e+00 : f32
      %54 = vector.broadcast %cst_39 : f32 to vector<16x16xf32>
      %c0_40 = arith.constant 0 : index
      %c0_41 = arith.constant 0 : index
      %55 = vector.load %arg7[%c0_40, %c0_41] : memref<16x16xf32, #tpu.memory_space<vmem>>, vector<16x16xf32>
      tpu.vector_store %arg7[%c0_40, %c0_41], %54 {strides = array<i32>} : memref<16x16xf32, #tpu.memory_space<vmem>>, vector<16x16xf32>,
      %cst_42 = arith.constant 0.000000e+00 : f32
      %56 = vector.broadcast %cst_42 : f32 to vector<16x16xf32>
      %c0_43 = arith.constant 0 : index
      %c0_44 = arith.constant 0 : index
      %57 = vector.load %arg8[%c0_43, %c0_44] : memref<16x16xf32, #tpu.memory_space<vmem>>, vector<16x16xf32>
      tpu.vector_store %arg8[%c0_43, %c0_44], %56 {strides = array<i32>} : memref<16x16xf32, #tpu.memory_space<vmem>>, vector<16x16xf32>,
    } else {
    }
    %c0 = arith.constant 0 : index
    %c0_3 = arith.constant 0 : index
    %c0_4 = arith.constant 0 : index
    %c0_5 = arith.constant 0 : index
    %8 = vector.load %arg2[%c0, %c0_3, %c0_4, %c0_5] : memref<1x2x16x16xf32, #tpu.memory_space<vmem>>, vector<1x1x16x16xf32>
    %9 = vector.shape_cast %8 : vector<1x1x16x16xf32> to vector<16x16xf32>
    %c0_6 = arith.constant 0 : index
    %c1 = arith.constant 1 : index
    %c0_7 = arith.constant 0 : index
    %c0_8 = arith.constant 0 : index
    %10 = vector.load %arg2[%c0_6, %c1, %c0_7, %c0_8] : memref<1x2x16x16xf32, #tpu.memory_space<vmem>>, vector<1x1x16x16xf32>
    %11 = vector.shape_cast %10 : vector<1x1x16x16xf32> to vector<16x16xf32>
    %c0_9 = arith.constant 0 : index
    %c0_10 = arith.constant 0 : index
    %c0_11 = arith.constant 0 : index
    %12 = vector.load %arg3[%c0_9, %c0_10, %c0_11] : memref<1x16x16xbf16, #tpu.memory_space<vmem>>, vector<1x16x16xbf16>
    %13 = vector.shape_cast %12 : vector<1x16x16xbf16> to vector<16x16xbf16>
    %14 = arith.extf %13 : vector<16x16xbf16> to vector<16x16xf32>
    %15 = arith.subf %11, %9 : vector<16x16xf32>
    %16 = math.absf %15 : vector<16x16xf32>
    %cst = arith.constant 0.000000e+00 : f32
    %17 = vector.broadcast %cst : f32 to vector<16x16xf32>
    %18 = arith.subf %17, %16 : vector<16x16xf32>
    %19 = math.exp %18 : vector<16x16xf32>
    %cst_12 = arith.constant 0.000000e+00 : f32
    %20 = vector.broadcast %cst_12 : f32 to vector<16x16xf32>
    %21 = arith.maximumf %15, %20 : vector<16x16xf32>
    %cst_13 = arith.constant 1.000000e+00 : f32
    %22 = vector.broadcast %cst_13 : f32 to vector<16x16xf32>
    %23 = arith.addf %22, %19 : vector<16x16xf32>
    %24 = math.log %23 : vector<16x16xf32>
    %25 = arith.addf %21, %24 : vector<16x16xf32>
    %26 = arith.mulf %14, %15 : vector<16x16xf32>
    %27 = arith.subf %25, %26 : vector<16x16xf32>
    %cst_14 = arith.constant 1.000000e+00 : f32
    %28 = vector.broadcast %cst_14 : f32 to vector<16x16xf32>
    %29 = arith.addf %28, %19 : vector<16x16xf32>
    %30 = tpu.reciprocal %29 {approx = true} : vector<16x16xf32> -> vector<16x16xf32>
    %cst_15 = arith.constant 0.000000e+00 : f32
    %31 = vector.broadcast %cst_15 : f32 to vector<16x16xf32>
    %32 = arith.cmpf oge, %15, %31 : vector<16x16xf32>
    %33 = arith.mulf %19, %30 : vector<16x16xf32>
    %34 = arith.select %32, %30, %33 : vector<16x16xi1>, vector<16x16xf32>
    %c0_16 = arith.constant 0 : index
    %c0_17 = arith.constant 0 : index
    %35 = vector.load %arg5[%c0_16, %c0_17] : memref<16x16xf32, #tpu.memory_space<vmem>>, vector<16x16xf32>
    %36 = arith.addf %35, %27 : vector<16x16xf32>
    %c0_18 = arith.constant 0 : index
    %c0_19 = arith.constant 0 : index
    %37 = vector.load %arg5[%c0_18, %c0_19] : memref<16x16xf32, #tpu.memory_space<vmem>>, vector<16x16xf32>
    tpu.vector_store %arg5[%c0_18, %c0_19], %36 {strides = array<i32>} : memref<16x16xf32, #tpu.memory_space<vmem>>, vector<16x16xf32>,
    %c0_20 = arith.constant 0 : index
    %c0_21 = arith.constant 0 : index
    %38 = vector.load %arg6[%c0_20, %c0_21] : memref<16x16xf32, #tpu.memory_space<vmem>>, vector<16x16xf32>
    %39 = arith.mulf %34, %14 : vector<16x16xf32>
    %40 = arith.addf %38, %39 : vector<16x16xf32>
    %c0_22 = arith.constant 0 : index
    %c0_23 = arith.constant 0 : index
    %41 = vector.load %arg6[%c0_22, %c0_23] : memref<16x16xf32, #tpu.memory_space<vmem>>, vector<16x16xf32>
    tpu.vector_store %arg6[%c0_22, %c0_23], %40 {strides = array<i32>} : memref<16x16xf32, #tpu.memory_space<vmem>>, vector<16x16xf32>,
    %c0_24 = arith.constant 0 : index
    %c0_25 = arith.constant 0 : index
    %42 = vector.load %arg7[%c0_24, %c0_25] : memref<16x16xf32, #tpu.memory_space<vmem>>, vector<16x16xf32>
    %43 = arith.addf %42, %34 : vector<16x16xf32>
    %c0_26 = arith.constant 0 : index
    %c0_27 = arith.constant 0 : index
    %44 = vector.load %arg7[%c0_26, %c0_27] : memref<16x16xf32, #tpu.memory_space<vmem>>, vector<16x16xf32>
    tpu.vector_store %arg7[%c0_26, %c0_27], %43 {strides = array<i32>} : memref<16x16xf32, #tpu.memory_space<vmem>>, vector<16x16xf32>,
    %c0_28 = arith.constant 0 : index
    %c0_29 = arith.constant 0 : index
    %45 = vector.load %arg8[%c0_28, %c0_29] : memref<16x16xf32, #tpu.memory_space<vmem>>, vector<16x16xf32>
    %46 = arith.addf %45, %14 : vector<16x16xf32>
    %c0_30 = arith.constant 0 : index
    %c0_31 = arith.constant 0 : index
    %47 = vector.load %arg8[%c0_30, %c0_31] : memref<16x16xf32, #tpu.memory_space<vmem>>, vector<16x16xf32>
    tpu.vector_store %arg8[%c0_30, %c0_31], %46 {strides = array<i32>} : memref<16x16xf32, #tpu.memory_space<vmem>>, vector<16x16xf32>,
    %48 = arith.extui %5 : i1 to i32
    %c0_i32_32 = arith.constant 0 : i32
    %49 = arith.cmpi ne, %48, %c0_i32_32 : i32
    scf.if %49 {
      %c0_33 = arith.constant 0 : index
      %c0_34 = arith.constant 0 : index
      %50 = vector.load %arg5[%c0_33, %c0_34] : memref<16x16xf32, #tpu.memory_space<vmem>>, vector<16x16xf32>
      %51 = vector.shape_cast %50 : vector<16x16xf32> to vector<1x16x16xf32>
      %cst_35 = arith.constant dense<0.000000e+00> : vector<1xf32>
      %52 = vector.multi_reduction <add>, %51, %cst_35 [1, 2] : vector<1x16x16xf32> to vector<1xf32>
      %53 = vector.shape_cast %52 : vector<1xf32> to vector<1x1x1xf32>
      %54 = vector.extract %53[0, 0, 0] : f32 from vector<1x1x1xf32>
      %c0_36 = arith.constant 0 : index
      %55 = memref.load %arg4[%c0_36] : memref<4xf32, #tpu.memory_space<smem>>
      memref.store %54, %arg4[%c0_36] : memref<4xf32, #tpu.memory_space<smem>>
      %c0_37 = arith.constant 0 : index
      %c0_38 = arith.constant 0 : index
      %56 = vector.load %arg6[%c0_37, %c0_38] : memref<16x16xf32, #tpu.memory_space<vmem>>, vector<16x16xf32>
      %57 = vector.shape_cast %56 : vector<16x16xf32> to vector<1x16x16xf32>
      %cst_39 = arith.constant dense<0.000000e+00> : vector<1xf32>
      %58 = vector.multi_reduction <add>, %57, %cst_39 [1, 2] : vector<1x16x16xf32> to vector<1xf32>
      %59 = vector.shape_cast %58 : vector<1xf32> to vector<1x1x1xf32>
      %60 = vector.extract %59[0, 0, 0] : f32 from vector<1x1x1xf32>
      %c1_40 = arith.constant 1 : index
      %61 = memref.load %arg4[%c1_40] : memref<4xf32, #tpu.memory_space<smem>>
      memref.store %60, %arg4[%c1_40] : memref<4xf32, #tpu.memory_space<smem>>
      %c0_41 = arith.constant 0 : index
      %c0_42 = arith.constant 0 : index
      %62 = vector.load %arg7[%c0_41, %c0_42] : memref<16x16xf32, #tpu.memory_space<vmem>>, vector<16x16xf32>
      %63 = vector.shape_cast %62 : vector<16x16xf32> to vector<1x16x16xf32>
      %cst_43 = arith.constant dense<0.000000e+00> : vector<1xf32>
      %64 = vector.multi_reduction <add>, %63, %cst_43 [1, 2] : vector<1x16x16xf32> to vector<1xf32>
      %65 = vector.shape_cast %64 : vector<1xf32> to vector<1x1x1xf32>
      %66 = vector.extract %65[0, 0, 0] : f32 from vector<1x1x1xf32>
      %c2 = arith.constant 2 : index
      %67 = memref.load %arg4[%c2] : memref<4xf32, #tpu.memory_space<smem>>
      memref.store %66, %arg4[%c2] : memref<4xf32, #tpu.memory_space<smem>>
      %c0_44 = arith.constant 0 : index
      %c0_45 = arith.constant 0 : index
      %68 = vector.load %arg8[%c0_44, %c0_45] : memref<16x16xf32, #tpu.memory_space<vmem>>, vector<16x16xf32>
      %69 = vector.shape_cast %68 : vector<16x16xf32> to vector<1x16x16xf32>
      %cst_46 = arith.constant dense<0.000000e+00> : vector<1xf32>
      %70 = vector.multi_reduction <add>, %69, %cst_46 [1, 2] : vector<1x16x16xf32> to vector<1xf32>
      %71 = vector.shape_cast %70 : vector<1xf32> to vector<1x1x1xf32>
      %72 = vector.extract %71[0, 0, 0] : f32 from vector<1x1x1xf32>
      %c3 = arith.constant 3 : index
      %73 = memref.load %arg4[%c3] : memref<4xf32, #tpu.memory_space<smem>>
      memref.store %72, %arg4[%c3] : memref<4xf32, #tpu.memory_space<smem>>
    } else {
    }
    return
  }
  func.func @transform_0(%arg0: i32, %arg1: i32) -> (i32, i32, i32, i32) {
    %c0_i32 = arith.constant 0 : i32
    %c0_i32_0 = arith.constant 0 : i32
    %c0_i32_1 = arith.constant 0 : i32
    return %arg0, %c0_i32, %arg1, %c0_i32_0 : i32, i32, i32, i32
  }
  func.func @transform_1(%arg0: i32, %arg1: i32) -> (i32, i32, i32) {
    %c0_i32 = arith.constant 0 : i32
    %c0_i32_0 = arith.constant 0 : i32
    return %arg0, %arg1, %c0_i32 : i32, i32, i32
  }
  func.func @transform_2(%arg0: i32, %arg1: i32) -> i32 {
    %c0_i32 = arith.constant 0 : i32
    %c0_i32_0 = arith.constant 0 : i32
    return %c0_i32 : i32
  }
}

module attributes {stable_mosaic.version = 11 : i64} {
  func.func @_scale_loss_kernel(%arg0: i32, %arg1: i32, %arg2: memref<1x2x8x8xf32, #tpu.memory_space<vmem>>, %arg3: memref<1x8x8xbf16, #tpu.memory_space<vmem>>, %arg4: memref<4xf32, #tpu.memory_space<smem>>, %arg5: memref<8x8xf32, #tpu.memory_space<vmem>>, %arg6: memref<8x8xf32, #tpu.memory_space<vmem>>, %arg7: memref<8x8xf32, #tpu.memory_space<vmem>>, %arg8: memref<8x8xf32, #tpu.memory_space<vmem>>) attributes {dimension_semantics = [#tpu.dimension_semantics<arbitrary>, #tpu.dimension_semantics<arbitrary>], iteration_bounds = array<i64: 2, 1>, scalar_prefetch = 0 : i64, scratch_operands = 4 : i64, tpu.core_type = #tpu.core_type<tc>, window_params = [{transform_indices = @transform_0, window_bounds = array<i64: 1, 2, 8, 8>}, {transform_indices = @transform_1, window_bounds = array<i64: 1, 8, 8>}, {transform_indices = @transform_2, window_bounds = array<i64: 4>}]} {
    %c0_i32 = arith.constant 0 : i32
    %0 = arith.cmpi eq, %arg0, %c0_i32 : i32
    %c0_i32_0 = arith.constant 0 : i32
    %1 = arith.cmpi eq, %arg1, %c0_i32_0 : i32
    %2 = arith.andi %0, %1 : i1
    %c1_i32 = arith.constant 1 : i32
    %3 = arith.cmpi eq, %arg0, %c1_i32 : i32
    %c0_i32_1 = arith.constant 0 : i32
    %4 = arith.cmpi eq, %arg1, %c0_i32_1 : i32
    %5 = arith.andi %3, %4 : i1
    %6 = arith.extui %2 : i1 to i32
    %c0_i32_2 = arith.constant 0 : i32
    %7 = arith.cmpi ne, %6, %c0_i32_2 : i32
    scf.if %7 {
      %cst_33 = arith.constant 0.000000e+00 : f32
      %50 = vector.broadcast %cst_33 : f32 to vector<8x8xf32>
      %c0_34 = arith.constant 0 : index
      %c0_35 = arith.constant 0 : index
      %51 = vector.load %arg5[%c0_34, %c0_35] : memref<8x8xf32, #tpu.memory_space<vmem>>, vector<8x8xf32>
      tpu.vector_store %arg5[%c0_34, %c0_35], %50 {strides = array<i32>} : memref<8x8xf32, #tpu.memory_space<vmem>>, vector<8x8xf32>,
      %cst_36 = arith.constant 0.000000e+00 : f32
      %52 = vector.broadcast %cst_36 : f32 to vector<8x8xf32>
      %c0_37 = arith.constant 0 : index
      %c0_38 = arith.constant 0 : index
      %53 = vector.load %arg6[%c0_37, %c0_38] : memref<8x8xf32, #tpu.memory_space<vmem>>, vector<8x8xf32>
      tpu.vector_store %arg6[%c0_37, %c0_38], %52 {strides = array<i32>} : memref<8x8xf32, #tpu.memory_space<vmem>>, vector<8x8xf32>,
      %cst_39 = arith.constant 0.000000e+00 : f32
      %54 = vector.broadcast %cst_39 : f32 to vector<8x8xf32>
      %c0_40 = arith.constant 0 : index
      %c0_41 = arith.constant 0 : index
      %55 = vector.load %arg7[%c0_40, %c0_41] : memref<8x8xf32, #tpu.memory_space<vmem>>, vector<8x8xf32>
      tpu.vector_store %arg7[%c0_40, %c0_41], %54 {strides = array<i32>} : memref<8x8xf32, #tpu.memory_space<vmem>>, vector<8x8xf32>,
      %cst_42 = arith.constant 0.000000e+00 : f32
      %56 = vector.broadcast %cst_42 : f32 to vector<8x8xf32>
      %c0_43 = arith.constant 0 : index
      %c0_44 = arith.constant 0 : index
      %57 = vector.load %arg8[%c0_43, %c0_44] : memref<8x8xf32, #tpu.memory_space<vmem>>, vector<8x8xf32>
      tpu.vector_store %arg8[%c0_43, %c0_44], %56 {strides = array<i32>} : memref<8x8xf32, #tpu.memory_space<vmem>>, vector<8x8xf32>,
    } else {
    }
    %c0 = arith.constant 0 : index
    %c0_3 = arith.constant 0 : index
    %c0_4 = arith.constant 0 : index
    %c0_5 = arith.constant 0 : index
    %8 = vector.load %arg2[%c0, %c0_3, %c0_4, %c0_5] : memref<1x2x8x8xf32, #tpu.memory_space<vmem>>, vector<1x1x8x8xf32>
    %9 = vector.shape_cast %8 : vector<1x1x8x8xf32> to vector<8x8xf32>
    %c0_6 = arith.constant 0 : index
    %c1 = arith.constant 1 : index
    %c0_7 = arith.constant 0 : index
    %c0_8 = arith.constant 0 : index
    %10 = vector.load %arg2[%c0_6, %c1, %c0_7, %c0_8] : memref<1x2x8x8xf32, #tpu.memory_space<vmem>>, vector<1x1x8x8xf32>
    %11 = vector.shape_cast %10 : vector<1x1x8x8xf32> to vector<8x8xf32>
    %c0_9 = arith.constant 0 : index
    %c0_10 = arith.constant 0 : index
    %c0_11 = arith.constant 0 : index
    %12 = vector.load %arg3[%c0_9, %c0_10, %c0_11] : memref<1x8x8xbf16, #tpu.memory_space<vmem>>, vector<1x8x8xbf16>
    %13 = vector.shape_cast %12 : vector<1x8x8xbf16> to vector<8x8xbf16>
    %14 = arith.extf %13 : vector<8x8xbf16> to vector<8x8xf32>
    %15 = arith.subf %11, %9 : vector<8x8xf32>
    %16 = math.absf %15 : vector<8x8xf32>
    %cst = arith.constant 0.000000e+00 : f32
    %17 = vector.broadcast %cst : f32 to vector<8x8xf32>
    %18 = arith.subf %17, %16 : vector<8x8xf32>
    %19 = math.exp %18 : vector<8x8xf32>
    %cst_12 = arith.constant 0.000000e+00 : f32
    %20 = vector.broadcast %cst_12 : f32 to vector<8x8xf32>
    %21 = arith.maximumf %15, %20 : vector<8x8xf32>
    %cst_13 = arith.constant 1.000000e+00 : f32
    %22 = vector.broadcast %cst_13 : f32 to vector<8x8xf32>
    %23 = arith.addf %22, %19 : vector<8x8xf32>
    %24 = math.log %23 : vector<8x8xf32>
    %25 = arith.addf %21, %24 : vector<8x8xf32>
    %26 = arith.mulf %14, %15 : vector<8x8xf32>
    %27 = arith.subf %25, %26 : vector<8x8xf32>
    %cst_14 = arith.constant 1.000000e+00 : f32
    %28 = vector.broadcast %cst_14 : f32 to vector<8x8xf32>
    %29 = arith.addf %28, %19 : vector<8x8xf32>
    %30 = tpu.reciprocal %29 {approx = true} : vector<8x8xf32> -> vector<8x8xf32>
    %cst_15 = arith.constant 0.000000e+00 : f32
    %31 = vector.broadcast %cst_15 : f32 to vector<8x8xf32>
    %32 = arith.cmpf oge, %15, %31 : vector<8x8xf32>
    %33 = arith.mulf %19, %30 : vector<8x8xf32>
    %34 = arith.select %32, %30, %33 : vector<8x8xi1>, vector<8x8xf32>
    %c0_16 = arith.constant 0 : index
    %c0_17 = arith.constant 0 : index
    %35 = vector.load %arg5[%c0_16, %c0_17] : memref<8x8xf32, #tpu.memory_space<vmem>>, vector<8x8xf32>
    %36 = arith.addf %35, %27 : vector<8x8xf32>
    %c0_18 = arith.constant 0 : index
    %c0_19 = arith.constant 0 : index
    %37 = vector.load %arg5[%c0_18, %c0_19] : memref<8x8xf32, #tpu.memory_space<vmem>>, vector<8x8xf32>
    tpu.vector_store %arg5[%c0_18, %c0_19], %36 {strides = array<i32>} : memref<8x8xf32, #tpu.memory_space<vmem>>, vector<8x8xf32>,
    %c0_20 = arith.constant 0 : index
    %c0_21 = arith.constant 0 : index
    %38 = vector.load %arg6[%c0_20, %c0_21] : memref<8x8xf32, #tpu.memory_space<vmem>>, vector<8x8xf32>
    %39 = arith.mulf %34, %14 : vector<8x8xf32>
    %40 = arith.addf %38, %39 : vector<8x8xf32>
    %c0_22 = arith.constant 0 : index
    %c0_23 = arith.constant 0 : index
    %41 = vector.load %arg6[%c0_22, %c0_23] : memref<8x8xf32, #tpu.memory_space<vmem>>, vector<8x8xf32>
    tpu.vector_store %arg6[%c0_22, %c0_23], %40 {strides = array<i32>} : memref<8x8xf32, #tpu.memory_space<vmem>>, vector<8x8xf32>,
    %c0_24 = arith.constant 0 : index
    %c0_25 = arith.constant 0 : index
    %42 = vector.load %arg7[%c0_24, %c0_25] : memref<8x8xf32, #tpu.memory_space<vmem>>, vector<8x8xf32>
    %43 = arith.addf %42, %34 : vector<8x8xf32>
    %c0_26 = arith.constant 0 : index
    %c0_27 = arith.constant 0 : index
    %44 = vector.load %arg7[%c0_26, %c0_27] : memref<8x8xf32, #tpu.memory_space<vmem>>, vector<8x8xf32>
    tpu.vector_store %arg7[%c0_26, %c0_27], %43 {strides = array<i32>} : memref<8x8xf32, #tpu.memory_space<vmem>>, vector<8x8xf32>,
    %c0_28 = arith.constant 0 : index
    %c0_29 = arith.constant 0 : index
    %45 = vector.load %arg8[%c0_28, %c0_29] : memref<8x8xf32, #tpu.memory_space<vmem>>, vector<8x8xf32>
    %46 = arith.addf %45, %14 : vector<8x8xf32>
    %c0_30 = arith.constant 0 : index
    %c0_31 = arith.constant 0 : index
    %47 = vector.load %arg8[%c0_30, %c0_31] : memref<8x8xf32, #tpu.memory_space<vmem>>, vector<8x8xf32>
    tpu.vector_store %arg8[%c0_30, %c0_31], %46 {strides = array<i32>} : memref<8x8xf32, #tpu.memory_space<vmem>>, vector<8x8xf32>,
    %48 = arith.extui %5 : i1 to i32
    %c0_i32_32 = arith.constant 0 : i32
    %49 = arith.cmpi ne, %48, %c0_i32_32 : i32
    scf.if %49 {
      %c0_33 = arith.constant 0 : index
      %c0_34 = arith.constant 0 : index
      %50 = vector.load %arg5[%c0_33, %c0_34] : memref<8x8xf32, #tpu.memory_space<vmem>>, vector<8x8xf32>
      %51 = vector.shape_cast %50 : vector<8x8xf32> to vector<1x8x8xf32>
      %cst_35 = arith.constant dense<0.000000e+00> : vector<1xf32>
      %52 = vector.multi_reduction <add>, %51, %cst_35 [1, 2] : vector<1x8x8xf32> to vector<1xf32>
      %53 = vector.shape_cast %52 : vector<1xf32> to vector<1x1x1xf32>
      %54 = vector.extract %53[0, 0, 0] : f32 from vector<1x1x1xf32>
      %c0_36 = arith.constant 0 : index
      %55 = memref.load %arg4[%c0_36] : memref<4xf32, #tpu.memory_space<smem>>
      memref.store %54, %arg4[%c0_36] : memref<4xf32, #tpu.memory_space<smem>>
      %c0_37 = arith.constant 0 : index
      %c0_38 = arith.constant 0 : index
      %56 = vector.load %arg6[%c0_37, %c0_38] : memref<8x8xf32, #tpu.memory_space<vmem>>, vector<8x8xf32>
      %57 = vector.shape_cast %56 : vector<8x8xf32> to vector<1x8x8xf32>
      %cst_39 = arith.constant dense<0.000000e+00> : vector<1xf32>
      %58 = vector.multi_reduction <add>, %57, %cst_39 [1, 2] : vector<1x8x8xf32> to vector<1xf32>
      %59 = vector.shape_cast %58 : vector<1xf32> to vector<1x1x1xf32>
      %60 = vector.extract %59[0, 0, 0] : f32 from vector<1x1x1xf32>
      %c1_40 = arith.constant 1 : index
      %61 = memref.load %arg4[%c1_40] : memref<4xf32, #tpu.memory_space<smem>>
      memref.store %60, %arg4[%c1_40] : memref<4xf32, #tpu.memory_space<smem>>
      %c0_41 = arith.constant 0 : index
      %c0_42 = arith.constant 0 : index
      %62 = vector.load %arg7[%c0_41, %c0_42] : memref<8x8xf32, #tpu.memory_space<vmem>>, vector<8x8xf32>
      %63 = vector.shape_cast %62 : vector<8x8xf32> to vector<1x8x8xf32>
      %cst_43 = arith.constant dense<0.000000e+00> : vector<1xf32>
      %64 = vector.multi_reduction <add>, %63, %cst_43 [1, 2] : vector<1x8x8xf32> to vector<1xf32>
      %65 = vector.shape_cast %64 : vector<1xf32> to vector<1x1x1xf32>
      %66 = vector.extract %65[0, 0, 0] : f32 from vector<1x1x1xf32>
      %c2 = arith.constant 2 : index
      %67 = memref.load %arg4[%c2] : memref<4xf32, #tpu.memory_space<smem>>
      memref.store %66, %arg4[%c2] : memref<4xf32, #tpu.memory_space<smem>>
      %c0_44 = arith.constant 0 : index
      %c0_45 = arith.constant 0 : index
      %68 = vector.load %arg8[%c0_44, %c0_45] : memref<8x8xf32, #tpu.memory_space<vmem>>, vector<8x8xf32>
      %69 = vector.shape_cast %68 : vector<8x8xf32> to vector<1x8x8xf32>
      %cst_46 = arith.constant dense<0.000000e+00> : vector<1xf32>
      %70 = vector.multi_reduction <add>, %69, %cst_46 [1, 2] : vector<1x8x8xf32> to vector<1xf32>
      %71 = vector.shape_cast %70 : vector<1xf32> to vector<1x1x1xf32>
      %72 = vector.extract %71[0, 0, 0] : f32 from vector<1x1x1xf32>
      %c3 = arith.constant 3 : index
      %73 = memref.load %arg4[%c3] : memref<4xf32, #tpu.memory_space<smem>>
      memref.store %72, %arg4[%c3] : memref<4xf32, #tpu.memory_space<smem>>
    } else {
    }
    return
  }
  func.func @transform_0(%arg0: i32, %arg1: i32) -> (i32, i32, i32, i32) {
    %c0_i32 = arith.constant 0 : i32
    %c0_i32_0 = arith.constant 0 : i32
    %c0_i32_1 = arith.constant 0 : i32
    return %arg0, %c0_i32, %arg1, %c0_i32_0 : i32, i32, i32, i32
  }
  func.func @transform_1(%arg0: i32, %arg1: i32) -> (i32, i32, i32) {
    %c0_i32 = arith.constant 0 : i32
    %c0_i32_0 = arith.constant 0 : i32
    return %arg0, %arg1, %c0_i32 : i32, i32, i32
  }
  func.func @transform_2(%arg0: i32, %arg1: i32) -> i32 {
    %c0_i32 = arith.constant 0 : i32
    %c0_i32_0 = arith.constant 0 : i32
    return %c0_i32 : i32
  }
}

module attributes {stable_mosaic.version = 11 : i64} {
  func.func @_scale_loss_kernel(%arg0: i32, %arg1: i32, %arg2: memref<1x2x4x4xf32, #tpu.memory_space<vmem>>, %arg3: memref<1x4x4xbf16, #tpu.memory_space<vmem>>, %arg4: memref<4xf32, #tpu.memory_space<smem>>, %arg5: memref<4x4xf32, #tpu.memory_space<vmem>>, %arg6: memref<4x4xf32, #tpu.memory_space<vmem>>, %arg7: memref<4x4xf32, #tpu.memory_space<vmem>>, %arg8: memref<4x4xf32, #tpu.memory_space<vmem>>) attributes {dimension_semantics = [#tpu.dimension_semantics<arbitrary>, #tpu.dimension_semantics<arbitrary>], iteration_bounds = array<i64: 2, 1>, scalar_prefetch = 0 : i64, scratch_operands = 4 : i64, tpu.core_type = #tpu.core_type<tc>, window_params = [{transform_indices = @transform_0, window_bounds = array<i64: 1, 2, 4, 4>}, {transform_indices = @transform_1, window_bounds = array<i64: 1, 4, 4>}, {transform_indices = @transform_2, window_bounds = array<i64: 4>}]} {
    %c0_i32 = arith.constant 0 : i32
    %0 = arith.cmpi eq, %arg0, %c0_i32 : i32
    %c0_i32_0 = arith.constant 0 : i32
    %1 = arith.cmpi eq, %arg1, %c0_i32_0 : i32
    %2 = arith.andi %0, %1 : i1
    %c1_i32 = arith.constant 1 : i32
    %3 = arith.cmpi eq, %arg0, %c1_i32 : i32
    %c0_i32_1 = arith.constant 0 : i32
    %4 = arith.cmpi eq, %arg1, %c0_i32_1 : i32
    %5 = arith.andi %3, %4 : i1
    %6 = arith.extui %2 : i1 to i32
    %c0_i32_2 = arith.constant 0 : i32
    %7 = arith.cmpi ne, %6, %c0_i32_2 : i32
    scf.if %7 {
      %cst_33 = arith.constant 0.000000e+00 : f32
      %50 = vector.broadcast %cst_33 : f32 to vector<4x4xf32>
      %c0_34 = arith.constant 0 : index
      %c0_35 = arith.constant 0 : index
      %51 = vector.load %arg5[%c0_34, %c0_35] : memref<4x4xf32, #tpu.memory_space<vmem>>, vector<4x4xf32>
      tpu.vector_store %arg5[%c0_34, %c0_35], %50 {strides = array<i32>} : memref<4x4xf32, #tpu.memory_space<vmem>>, vector<4x4xf32>,
      %cst_36 = arith.constant 0.000000e+00 : f32
      %52 = vector.broadcast %cst_36 : f32 to vector<4x4xf32>
      %c0_37 = arith.constant 0 : index
      %c0_38 = arith.constant 0 : index
      %53 = vector.load %arg6[%c0_37, %c0_38] : memref<4x4xf32, #tpu.memory_space<vmem>>, vector<4x4xf32>
      tpu.vector_store %arg6[%c0_37, %c0_38], %52 {strides = array<i32>} : memref<4x4xf32, #tpu.memory_space<vmem>>, vector<4x4xf32>,
      %cst_39 = arith.constant 0.000000e+00 : f32
      %54 = vector.broadcast %cst_39 : f32 to vector<4x4xf32>
      %c0_40 = arith.constant 0 : index
      %c0_41 = arith.constant 0 : index
      %55 = vector.load %arg7[%c0_40, %c0_41] : memref<4x4xf32, #tpu.memory_space<vmem>>, vector<4x4xf32>
      tpu.vector_store %arg7[%c0_40, %c0_41], %54 {strides = array<i32>} : memref<4x4xf32, #tpu.memory_space<vmem>>, vector<4x4xf32>,
      %cst_42 = arith.constant 0.000000e+00 : f32
      %56 = vector.broadcast %cst_42 : f32 to vector<4x4xf32>
      %c0_43 = arith.constant 0 : index
      %c0_44 = arith.constant 0 : index
      %57 = vector.load %arg8[%c0_43, %c0_44] : memref<4x4xf32, #tpu.memory_space<vmem>>, vector<4x4xf32>
      tpu.vector_store %arg8[%c0_43, %c0_44], %56 {strides = array<i32>} : memref<4x4xf32, #tpu.memory_space<vmem>>, vector<4x4xf32>,
    } else {
    }
    %c0 = arith.constant 0 : index
    %c0_3 = arith.constant 0 : index
    %c0_4 = arith.constant 0 : index
    %c0_5 = arith.constant 0 : index
    %8 = vector.load %arg2[%c0, %c0_3, %c0_4, %c0_5] : memref<1x2x4x4xf32, #tpu.memory_space<vmem>>, vector<1x1x4x4xf32>
    %9 = vector.shape_cast %8 : vector<1x1x4x4xf32> to vector<4x4xf32>
    %c0_6 = arith.constant 0 : index
    %c1 = arith.constant 1 : index
    %c0_7 = arith.constant 0 : index
    %c0_8 = arith.constant 0 : index
    %10 = vector.load %arg2[%c0_6, %c1, %c0_7, %c0_8] : memref<1x2x4x4xf32, #tpu.memory_space<vmem>>, vector<1x1x4x4xf32>
    %11 = vector.shape_cast %10 : vector<1x1x4x4xf32> to vector<4x4xf32>
    %c0_9 = arith.constant 0 : index
    %c0_10 = arith.constant 0 : index
    %c0_11 = arith.constant 0 : index
    %12 = vector.load %arg3[%c0_9, %c0_10, %c0_11] : memref<1x4x4xbf16, #tpu.memory_space<vmem>>, vector<1x4x4xbf16>
    %13 = vector.shape_cast %12 : vector<1x4x4xbf16> to vector<4x4xbf16>
    %14 = arith.extf %13 : vector<4x4xbf16> to vector<4x4xf32>
    %15 = arith.subf %11, %9 : vector<4x4xf32>
    %16 = math.absf %15 : vector<4x4xf32>
    %cst = arith.constant 0.000000e+00 : f32
    %17 = vector.broadcast %cst : f32 to vector<4x4xf32>
    %18 = arith.subf %17, %16 : vector<4x4xf32>
    %19 = math.exp %18 : vector<4x4xf32>
    %cst_12 = arith.constant 0.000000e+00 : f32
    %20 = vector.broadcast %cst_12 : f32 to vector<4x4xf32>
    %21 = arith.maximumf %15, %20 : vector<4x4xf32>
    %cst_13 = arith.constant 1.000000e+00 : f32
    %22 = vector.broadcast %cst_13 : f32 to vector<4x4xf32>
    %23 = arith.addf %22, %19 : vector<4x4xf32>
    %24 = math.log %23 : vector<4x4xf32>
    %25 = arith.addf %21, %24 : vector<4x4xf32>
    %26 = arith.mulf %14, %15 : vector<4x4xf32>
    %27 = arith.subf %25, %26 : vector<4x4xf32>
    %cst_14 = arith.constant 1.000000e+00 : f32
    %28 = vector.broadcast %cst_14 : f32 to vector<4x4xf32>
    %29 = arith.addf %28, %19 : vector<4x4xf32>
    %30 = tpu.reciprocal %29 {approx = true} : vector<4x4xf32> -> vector<4x4xf32>
    %cst_15 = arith.constant 0.000000e+00 : f32
    %31 = vector.broadcast %cst_15 : f32 to vector<4x4xf32>
    %32 = arith.cmpf oge, %15, %31 : vector<4x4xf32>
    %33 = arith.mulf %19, %30 : vector<4x4xf32>
    %34 = arith.select %32, %30, %33 : vector<4x4xi1>, vector<4x4xf32>
    %c0_16 = arith.constant 0 : index
    %c0_17 = arith.constant 0 : index
    %35 = vector.load %arg5[%c0_16, %c0_17] : memref<4x4xf32, #tpu.memory_space<vmem>>, vector<4x4xf32>
    %36 = arith.addf %35, %27 : vector<4x4xf32>
    %c0_18 = arith.constant 0 : index
    %c0_19 = arith.constant 0 : index
    %37 = vector.load %arg5[%c0_18, %c0_19] : memref<4x4xf32, #tpu.memory_space<vmem>>, vector<4x4xf32>
    tpu.vector_store %arg5[%c0_18, %c0_19], %36 {strides = array<i32>} : memref<4x4xf32, #tpu.memory_space<vmem>>, vector<4x4xf32>,
    %c0_20 = arith.constant 0 : index
    %c0_21 = arith.constant 0 : index
    %38 = vector.load %arg6[%c0_20, %c0_21] : memref<4x4xf32, #tpu.memory_space<vmem>>, vector<4x4xf32>
    %39 = arith.mulf %34, %14 : vector<4x4xf32>
    %40 = arith.addf %38, %39 : vector<4x4xf32>
    %c0_22 = arith.constant 0 : index
    %c0_23 = arith.constant 0 : index
    %41 = vector.load %arg6[%c0_22, %c0_23] : memref<4x4xf32, #tpu.memory_space<vmem>>, vector<4x4xf32>
    tpu.vector_store %arg6[%c0_22, %c0_23], %40 {strides = array<i32>} : memref<4x4xf32, #tpu.memory_space<vmem>>, vector<4x4xf32>,
    %c0_24 = arith.constant 0 : index
    %c0_25 = arith.constant 0 : index
    %42 = vector.load %arg7[%c0_24, %c0_25] : memref<4x4xf32, #tpu.memory_space<vmem>>, vector<4x4xf32>
    %43 = arith.addf %42, %34 : vector<4x4xf32>
    %c0_26 = arith.constant 0 : index
    %c0_27 = arith.constant 0 : index
    %44 = vector.load %arg7[%c0_26, %c0_27] : memref<4x4xf32, #tpu.memory_space<vmem>>, vector<4x4xf32>
    tpu.vector_store %arg7[%c0_26, %c0_27], %43 {strides = array<i32>} : memref<4x4xf32, #tpu.memory_space<vmem>>, vector<4x4xf32>,
    %c0_28 = arith.constant 0 : index
    %c0_29 = arith.constant 0 : index
    %45 = vector.load %arg8[%c0_28, %c0_29] : memref<4x4xf32, #tpu.memory_space<vmem>>, vector<4x4xf32>
    %46 = arith.addf %45, %14 : vector<4x4xf32>
    %c0_30 = arith.constant 0 : index
    %c0_31 = arith.constant 0 : index
    %47 = vector.load %arg8[%c0_30, %c0_31] : memref<4x4xf32, #tpu.memory_space<vmem>>, vector<4x4xf32>
    tpu.vector_store %arg8[%c0_30, %c0_31], %46 {strides = array<i32>} : memref<4x4xf32, #tpu.memory_space<vmem>>, vector<4x4xf32>,
    %48 = arith.extui %5 : i1 to i32
    %c0_i32_32 = arith.constant 0 : i32
    %49 = arith.cmpi ne, %48, %c0_i32_32 : i32
    scf.if %49 {
      %c0_33 = arith.constant 0 : index
      %c0_34 = arith.constant 0 : index
      %50 = vector.load %arg5[%c0_33, %c0_34] : memref<4x4xf32, #tpu.memory_space<vmem>>, vector<4x4xf32>
      %51 = vector.shape_cast %50 : vector<4x4xf32> to vector<1x4x4xf32>
      %cst_35 = arith.constant dense<0.000000e+00> : vector<1xf32>
      %52 = vector.multi_reduction <add>, %51, %cst_35 [1, 2] : vector<1x4x4xf32> to vector<1xf32>
      %53 = vector.shape_cast %52 : vector<1xf32> to vector<1x1x1xf32>
      %54 = vector.extract %53[0, 0, 0] : f32 from vector<1x1x1xf32>
      %c0_36 = arith.constant 0 : index
      %55 = memref.load %arg4[%c0_36] : memref<4xf32, #tpu.memory_space<smem>>
      memref.store %54, %arg4[%c0_36] : memref<4xf32, #tpu.memory_space<smem>>
      %c0_37 = arith.constant 0 : index
      %c0_38 = arith.constant 0 : index
      %56 = vector.load %arg6[%c0_37, %c0_38] : memref<4x4xf32, #tpu.memory_space<vmem>>, vector<4x4xf32>
      %57 = vector.shape_cast %56 : vector<4x4xf32> to vector<1x4x4xf32>
      %cst_39 = arith.constant dense<0.000000e+00> : vector<1xf32>
      %58 = vector.multi_reduction <add>, %57, %cst_39 [1, 2] : vector<1x4x4xf32> to vector<1xf32>
      %59 = vector.shape_cast %58 : vector<1xf32> to vector<1x1x1xf32>
      %60 = vector.extract %59[0, 0, 0] : f32 from vector<1x1x1xf32>
      %c1_40 = arith.constant 1 : index
      %61 = memref.load %arg4[%c1_40] : memref<4xf32, #tpu.memory_space<smem>>
      memref.store %60, %arg4[%c1_40] : memref<4xf32, #tpu.memory_space<smem>>
      %c0_41 = arith.constant 0 : index
      %c0_42 = arith.constant 0 : index
      %62 = vector.load %arg7[%c0_41, %c0_42] : memref<4x4xf32, #tpu.memory_space<vmem>>, vector<4x4xf32>
      %63 = vector.shape_cast %62 : vector<4x4xf32> to vector<1x4x4xf32>
      %cst_43 = arith.constant dense<0.000000e+00> : vector<1xf32>
      %64 = vector.multi_reduction <add>, %63, %cst_43 [1, 2] : vector<1x4x4xf32> to vector<1xf32>
      %65 = vector.shape_cast %64 : vector<1xf32> to vector<1x1x1xf32>
      %66 = vector.extract %65[0, 0, 0] : f32 from vector<1x1x1xf32>
      %c2 = arith.constant 2 : index
      %67 = memref.load %arg4[%c2] : memref<4xf32, #tpu.memory_space<smem>>
      memref.store %66, %arg4[%c2] : memref<4xf32, #tpu.memory_space<smem>>
      %c0_44 = arith.constant 0 : index
      %c0_45 = arith.constant 0 : index
      %68 = vector.load %arg8[%c0_44, %c0_45] : memref<4x4xf32, #tpu.memory_space<vmem>>, vector<4x4xf32>
      %69 = vector.shape_cast %68 : vector<4x4xf32> to vector<1x4x4xf32>
      %cst_46 = arith.constant dense<0.000000e+00> : vector<1xf32>
      %70 = vector.multi_reduction <add>, %69, %cst_46 [1, 2] : vector<1x4x4xf32> to vector<1xf32>
      %71 = vector.shape_cast %70 : vector<1xf32> to vector<1x1x1xf32>
      %72 = vector.extract %71[0, 0, 0] : f32 from vector<1x1x1xf32>
      %c3 = arith.constant 3 : index
      %73 = memref.load %arg4[%c3] : memref<4xf32, #tpu.memory_space<smem>>
      memref.store %72, %arg4[%c3] : memref<4xf32, #tpu.memory_space<smem>>
    } else {
    }
    return
  }
  func.func @transform_0(%arg0: i32, %arg1: i32) -> (i32, i32, i32, i32) {
    %c0_i32 = arith.constant 0 : i32
    %c0_i32_0 = arith.constant 0 : i32
    %c0_i32_1 = arith.constant 0 : i32
    return %arg0, %c0_i32, %arg1, %c0_i32_0 : i32, i32, i32, i32
  }
  func.func @transform_1(%arg0: i32, %arg1: i32) -> (i32, i32, i32) {
    %c0_i32 = arith.constant 0 : i32
    %c0_i32_0 = arith.constant 0 : i32
    return %arg0, %arg1, %c0_i32 : i32, i32, i32
  }
  func.func @transform_2(%arg0: i32, %arg1: i32) -> i32 {
    %c0_i32 = arith.constant 0 : i32
    %c0_i32_0 = arith.constant 0 : i32
    return %c0_i32 : i32
  }
}

</mosaic_0001>

<llo_original>
// kernel: contra_hybrid_loss_forward.4
$region0: #{contra_hybrid_loss_forward.4}
  #allocation0 [shape = 'u32[]', space=smem, size = 0x4, offset = 0x4, fixed_abs, tag = 'smem constant byte address 0x4 - core index']
  #allocation1 [shape = 'u32[144,128]{1,0:T(1,128)}', space=vmem, size = 0x12000, scoped, tag = 'internal scratch']
  #allocation2 [shape = 'f32[8,8]{1,0:T(8,128)}', space=vmem, size = 0x1000, scoped, tag = 'scratch operand']
  #allocation3 [shape = 'f32[8,8]{1,0:T(8,128)}', space=vmem, size = 0x1000, scoped, tag = 'scratch operand']
  #allocation4 [shape = 'f32[8,8]{1,0:T(8,128)}', space=vmem, size = 0x1000, scoped, tag = 'scratch operand']
  #allocation5 [shape = 'f32[8,8]{1,0:T(8,128)}', space=vmem, size = 0x1000, scoped, tag = 'scratch operand']
  %s0 = inlined_call_operand.vmem [shape: f32[2,2,8,8], index: 0, kind: input, shape index: {}]
  %s1 = inlined_call_operand.vmem [shape: bf16[2,8,8], index: 1, kind: input, shape index: {}]
  %s2 = inlined_call_operand.vmem [shape: f32[4], index: 2, kind: output, shape index: {}]
  %s3 = sld [smem:[#allocation0]]
  $region49: #{contra_hybrid_loss_forward.4} parent=0
    _
  %s5 = ssub.s32 1, %s3
  %s6 = scalar_select 0, %s5, %s3
  $region1: #{contra_hybrid_loss_forward.4} parent=0
    #allocation6 [shape = 'u8[512]{0}', space=smem, size = 0x200, scoped, tag = 'output window, operand 0, single buffered']
    #allocation7 [shape = 's32[2]{0}', space=sflag, size = 0x8, scoped, tag = 'scoped memory for contra_hybrid_loss_forward.4']
    %7 = vsyncpa [#allocation7], 0
    loop: start=0, step=1, limit=4
    $region2: #{contra_hybrid_loss_forward.4} parent=1 // loop_pre_header
      _
    $region3: #{contra_hybrid_loss_forward.4} parent=1 // loop_header
      %s9 = sphi 0, %s13
      %p10 = scmp.ge.s32.totalorder %s9, 4
      %s16 = sphi 0, %s28
      %s17 = sphi 0, %s24
      %s18 = sphi 0, %s16
      %s19 = sphi 0, %s17
      %s20 = sphi 0, %s18
      %s21 = sphi 0, %s19
      %s33 = sphi 0, %s35
      %s36 = sphi 0, %s33
      %s37 = sphi 0, %s36
      %s53 = sphi 0, %s37
      %s61 = sphi 0, %s63
      %s64 = sphi 0, %s61
      %s65 = sphi 0, %s64
      %s81 = sphi 0, %s65
      %s85 = sphi 0, %s85
      %s87 = sphi 0, %s85
      %s88 = sphi 0, %s87
      %s102 = sphi 0, %s88
    $region4: #{contra_hybrid_loss_forward.4} parent=1 // loop_header_branch
      %12 = sbr.rel (%p10) target = $region8
    $region5: #{contra_hybrid_loss_forward.4} parent=1 // loop_body
      %s14 = ssub.s32 %s9, 1
      %s15 = ssub.s32 %s9, 2
      %s22 = sadd.s32 1, %s17
      %p23 = scmp.ge.s32.totalorder %s22, 1
      %s24 = scalar_select %p23, 0, %s22
      %s25 = sadd.s32 1, %s16
      %s26 = scalar_select %p23, %s25, %s16
      %p27 = scmp.ge.s32.totalorder %s26, 2
      %s28 = scalar_select %p27, 0, %s26
      %s29 = ssub.s32 %s16, %s28
      %s30 = ssub.s32 %s17, %s24
      %s31 = sor.u32 %s29, %s30
      %p32 = scmp.eq.s32.totalorder %s31, 0
      %s34 = sadd.s32 %s33, 1
      %s35 = scalar_select %p32, %s33, %s34
      %p38 = pneg %p32
      %p39 = scmp.eq.s32.totalorder %s9, 1
      %p40 = por %p38, %p39
      %p41 = scmp.ne.s32.totalorder %s33, %s36
      %p42 = scmp.eq.s32.totalorder %s9, 0
      %p43 = por %p41, %p42
      %p44 = scmp.ne.s32.totalorder %s33, %s36
      %p45 = scmp.eq.s32.totalorder %s14, 1
      %p46 = por %p44, %p45
      %p47 = scmp.ne.s32.totalorder %s36, %s37
      %p48 = scmp.eq.s32.totalorder %s14, 0
      %p49 = por %p47, %p48
      %p50 = scmp.ne.s32.totalorder %s36, %s37
      %p51 = scmp.eq.s32.totalorder %s15, 1
      %p52 = por %p50, %p51
      %p54 = scmp.ne.s32.totalorder %s37, %s53
      %p55 = scmp.eq.s32.totalorder %s15, 0
      %p56 = por %p54, %p55
      %s57 = ssub.s32 %s16, %s28
      %s58 = ssub.s32 %s17, %s24
      %s59 = sor.u32 %s57, %s58
      %p60 = scmp.eq.s32.totalorder %s59, 0
      %s62 = sadd.s32 %s61, 1
      %s63 = scalar_select %p60, %s61, %s62
      %p66 = pneg %p60
      %p67 = scmp.eq.s32.totalorder %s9, 1
      %p68 = por %p66, %p67
      %p69 = scmp.ne.s32.totalorder %s61, %s64
      %p70 = scmp.eq.s32.totalorder %s9, 0
      %p71 = por %p69, %p70
      %p72 = scmp.ne.s32.totalorder %s61, %s64
      %p73 = scmp.eq.s32.totalorder %s14, 1
      %p74 = por %p72, %p73
      %p75 = scmp.ne.s32.totalorder %s64, %s65
      %p76 = scmp.eq.s32.totalorder %s14, 0
      %p77 = por %p75, %p76
      %p78 = scmp.ne.s32.totalorder %s64, %s65
      %p79 = scmp.eq.s32.totalorder %s15, 1
      %p80 = por %p78, %p79
      %p82 = scmp.ne.s32.totalorder %s65, %s81
      %p83 = scmp.eq.s32.totalorder %s15, 0
      %p84 = por %p82, %p83
      %s86 = sadd.s32 %s85, 1
      %p89 = scmp.eq.s32.totalorder %s9, 1
      %p90 = scmp.ne.s32.totalorder %s85, %s87
      %p91 = scmp.eq.s32.totalorder %s9, 0
      %p92 = por %p90, %p91
      %p93 = scmp.ne.s32.totalorder %s85, %s87
      %p94 = scmp.eq.s32.totalorder %s14, 1
      %p95 = por %p93, %p94
      %p96 = scmp.ne.s32.totalorder %s87, %s88
      %p97 = scmp.eq.s32.totalorder %s14, 0
      %p98 = por %p96, %p97
      %p99 = scmp.ne.s32.totalorder %s87, %s88
      %p100 = scmp.eq.s32.totalorder %s15, 1
      %p101 = por %p99, %p100
      %p103 = scmp.ne.s32.totalorder %s88, %s102
      %p104 = scmp.eq.s32.totalorder %s15, 0
      %p105 = por %p103, %p104
      %p106 = scmp.le.s32.totalorder 1, %s9
      %p107 = scmp.lt.s32.totalorder %s9, 3
      %p108 = pnand %p106, %p107
      %p109 = pneg %p108
      // Predicated region
      $region9: #{contra_hybrid_loss_forward.4} parent=5 // pred_check
        _
      $region10: #{contra_hybrid_loss_forward.4} parent=5 // pred_check_branch
        %111 = sbr.rel (%p108) target = $region12
      $region11: #{contra_hybrid_loss_forward.4} parent=5 // pred_region
        %s112 = ssub.s32 %s9, 1
      $region12: #{contra_hybrid_loss_forward.4} parent=5 // pred_fallthru
        _
      %p113 = scmp.lt.s32.totalorder %s9, 2
      // Predicated region
      $region13: #{contra_hybrid_loss_forward.4} parent=5 // pred_check
        %p114 = pneg %p113
      $region14: #{contra_hybrid_loss_forward.4} parent=5 // pred_check_branch
        %116 = sbr.rel (%p114) target = $region16
      $region15: #{contra_hybrid_loss_forward.4} parent=5 // pred_region
        // Predicated region
        $region17: #{contra_hybrid_loss_forward.4} parent=15 // pred_check
          %p117 = pneg %p43
        $region18: #{contra_hybrid_loss_forward.4} parent=15 // pred_check_branch
          %119 = sbr.rel (%p117) target = $region20
        $region19: #{contra_hybrid_loss_forward.4} parent=15 // pred_region
          %p120 = scmp.lt.s32.totalorder %s16, 1
          %s121 = scalar_select %p120, %s16, 1
          %p122 = scmp.lt.s32.totalorder %s17, 0
          %s123 = scalar_select %p122, %s17, 0
          %s124 = smul.addr %s121, 2
          %s125 = sadd.s32 %s123, %s124
          %s126 = smul.addr %s125, 8
          %s127 = scalar_lea.vmem %s0, %s126
        $region20: #{contra_hybrid_loss_forward.4} parent=15 // pred_fallthru
          _
        // Predicated region
        $region21: #{contra_hybrid_loss_forward.4} parent=15 // pred_check
          %p128 = pneg %p71
        $region22: #{contra_hybrid_loss_forward.4} parent=15 // pred_check_branch
          %130 = sbr.rel (%p128) target = $region24
        $region23: #{contra_hybrid_loss_forward.4} parent=15 // pred_region
          %p131 = scmp.lt.s32.totalorder %s16, 1
          %s132 = scalar_select %p131, %s16, 1
          %p133 = scmp.lt.s32.totalorder %s17, 0
          %s134 = scalar_select %p133, %s17, 0
          %s135 = sadd.s32 %s134, %s132
          %s136 = smul.addr %s135, 4
          %s137 = scalar_lea.vmem %s1, %s136
        $region24: #{contra_hybrid_loss_forward.4} parent=15 // pred_fallthru
          _
      $region16: #{contra_hybrid_loss_forward.4} parent=5 // pred_fallthru
        _
      %p138 = scmp.le.s32.totalorder 1, %s9
      %p139 = scmp.lt.s32.totalorder %s9, 3
      %p140 = pnand %p138, %p139
      %p141 = pneg %p140
      // Predicated region
      $region25: #{contra_hybrid_loss_forward.4} parent=5 // pred_check
        _
      $region26: #{contra_hybrid_loss_forward.4} parent=5 // pred_check_branch
        %143 = sbr.rel (%p140) target = $region28
      $region27: #{contra_hybrid_loss_forward.4} parent=5 // pred_region
        %s144 = ssub.s32 %s9, 1
        %p145 = scmp.lt.s32.totalorder %s18, 1
        %s146 = scalar_select %p145, %s18, 1
        %p147 = scmp.lt.s32.totalorder %s19, 0
        %s148 = scalar_select %p147, %s19, 0
        %s149 = smul.addr %s146, 2
        %s150 = sadd.s32 %s148, %s149
        %s151 = smul.addr %s150, 8
        %s152 = scalar_lea.vmem %s0, %s151
        %p153 = pneg %p49
        %p154 = pneg %p46
        %p155 = scmp.lt.s32.totalorder %s18, 1
        %s156 = scalar_select %p155, %s18, 1
        %p157 = scmp.lt.s32.totalorder %s19, 0
        %s158 = scalar_select %p157, %s19, 0
        %s159 = sadd.s32 %s158, %s156
        %s160 = smul.addr %s159, 4
        %s161 = scalar_lea.vmem %s1, %s160
        %p162 = pneg %p77
        %p163 = pneg %p74
        %p164 = pneg %p98
        %p165 = pneg %p95
        %p166 = scmp.lt.s32.totalorder %s18, 1
        %s167 = scalar_select %p166, %s18, 1
        %p168 = scmp.lt.s32.totalorder %s19, 0
        %s169 = scalar_select %p168, %s19, 0
        %s170 = smul.addr %s167, 2
        %s171 = sadd.s32 %s169, %s170
        %s172 = smul.addr %s171, 8
        %s173 = scalar_lea.vmem %s0, %s172
        %p174 = scmp.lt.s32.totalorder %s18, 1
        %s175 = scalar_select %p174, %s18, 1
        %p176 = scmp.lt.s32.totalorder %s19, 0
        %s177 = scalar_select %p176, %s19, 0
        %s178 = sadd.s32 %s177, %s175
        %s179 = smul.addr %s178, 4
        %s180 = scalar_lea.vmem %s1, %s179
        %p181 = scmp.eq.s32.totalorder %s18, 0
        %p182 = scmp.eq.s32.totalorder %s19, 0
        %p183 = pnand %p181, %p182
        %p184 = pneg %p183
        %p185 = scmp.eq.s32.totalorder %s18, 1
        %p186 = pnand %p185, %p182
        %p187 = pneg %p186
        // Predicated region
        $region29: #{contra_hybrid_loss_forward.4} parent=27 // pred_check
          _
        $region30: #{contra_hybrid_loss_forward.4} parent=27 // pred_check_branch
          %189 = sbr.rel (%p183) target = $region32
        $region31: #{contra_hybrid_loss_forward.4} parent=27 // pred_region
          %vm190 = vcmask 64512
          %191 = vst.msk [vmem:[#allocation2] sm:$0xff] %vm190, 0.0
          %192 = vst.msk [vmem:[#allocation3] sm:$0xff] %vm190, 0.0
          %193 = vst.msk [vmem:[#allocation4] sm:$0xff] %vm190, 0.0
          %194 = vst.msk [vmem:[#allocation5] sm:$0xff] %vm190, 0.0
        $region32: #{contra_hybrid_loss_forward.4} parent=27 // pred_fallthru
          _
        %v195 = vld [vmem:[%s173] sm:$0xff]
        %s196 = scalar_lea.vmem %s173, 8
        %v197 = vld [vmem:[%s196] sm:$0xff]
        %v198 = vld [vmem:[%s180] sm:$0xf]
        %v199 = vunpack.c.l.bf16 %v198
        %v200 = vsub.f32 %v197, %v195
        %v201 = vand.u32 2147483647, %v200
        %v202 = vsub.f32 0.0, %v201
        %v203 = vmul.f32 %v202, 1.442695
        %v204 = vpow.pop %v203
        %v205 = vmax.f32 %v200, 0.0
        %v206 = vadd.f32 %v204, 1.0
        %v207 = vlog2.pop %v206
        %v208 = vmul.f32 %v207, 0.6931472
        %v209 = vadd.f32 %v205, %v208
        %v210 = vmul.f32 %v199, %v200
        %v211 = vsub.f32 %v209, %v210
        %v212 = vrcp.pop %v206
        %vm213 = vcmp.ge.f32.partialorder %v200, 0.0
        %v214 = vmul.f32 %v204, %v212
        %v215 = vsel %vm213, %v212, %v214
        %v216 = vld [vmem:[#allocation2] sm:$0xff]
        %v217 = vadd.f32 %v216, %v211
        %vm218 = vcmask 64512
        %219 = vst.msk [vmem:[#allocation2] sm:$0xff] %vm218, %v217
        %v220 = vld [vmem:[#allocation3] sm:$0xff]
        %v221 = vmul.f32 %v215, %v199
        %v222 = vadd.f32 %v220, %v221
        %223 = vst.msk [vmem:[#allocation3] sm:$0xff] %vm218, %v222
        %v224 = vld [vmem:[#allocation4] sm:$0xff]
        %v225 = vadd.f32 %v224, %v215
        %226 = vst.msk [vmem:[#allocation4] sm:$0xff] %vm218, %v225
        %v227 = vld [vmem:[#allocation5] sm:$0xff]
        %v228 = vadd.f32 %v227, %v199
        %229 = vst.msk [vmem:[#allocation5] sm:$0xff] %vm218, %v228
        // Predicated region
        $region33: #{contra_hybrid_loss_forward.4} parent=27 // pred_check
          _
        $region34: #{contra_hybrid_loss_forward.4} parent=27 // pred_check_branch
          %231 = sbr.rel (%p186) target = $region36
        $region35: #{contra_hybrid_loss_forward.4} parent=27 // pred_region
          %v232 = vld [vmem:[#allocation2] sm:$0xff]
          %v233 = vsel %vm218, %v232, 0.0
          %234 = vadd.xlane.f32.xlu0 %v233
          %v235 = vpop.xlane.xlu0 %234
          %v236 = vrot.slane %v235, 4
          %v237 = vadd.f32 %v235, %v236
          %v238 = vrot.slane %v237, 2
          %v239 = vadd.f32 %v237, %v238
          %v240 = vrot.slane %v239, 1
          %v241 = vadd.f32 %v239, %v240
          %s242 = vtos %v241
          %s243 = scalar_lea.smem [#allocation6], 0
          %244 = sst [smem:[%s243]] %s242
          %v245 = vld [vmem:[#allocation3] sm:$0xff]
          %v246 = vsel %vm218, %v245, 0.0
          %247 = vadd.xlane.f32.xlu0 %v246
          %v248 = vpop.xlane.xlu0 %247
          %v249 = vrot.slane %v248, 4
          %v250 = vadd.f32 %v248, %v249
          %v251 = vrot.slane %v250, 2
          %v252 = vadd.f32 %v250, %v251
          %v253 = vrot.slane %v252, 1
          %v254 = vadd.f32 %v252, %v253
          %s255 = vtos %v254
          %s256 = scalar_lea.smem [#allocation6], 1
          %257 = sst [smem:[%s256]] %s255
          %v258 = vld [vmem:[#allocation4] sm:$0xff]
          %v259 = vsel %vm218, %v258, 0.0
          %260 = vadd.xlane.f32.xlu0 %v259
          %v261 = vpop.xlane.xlu0 %260
          %v262 = vrot.slane %v261, 4
          %v263 = vadd.f32 %v261, %v262
          %v264 = vrot.slane %v263, 2
          %v265 = vadd.f32 %v263, %v264
          %v266 = vrot.slane %v265, 1
          %v267 = vadd.f32 %v265, %v266
          %s268 = vtos %v267
          %s269 = scalar_lea.smem [#allocation6], 2
          %270 = sst [smem:[%s269]] %s268
          %v271 = vld [vmem:[#allocation5] sm:$0xff]
          %v272 = vsel %vm218, %v271, 0.0
          %273 = vadd.xlane.f32.xlu0 %v272
          %v274 = vpop.xlane.xlu0 %273
          %v275 = vrot.slane %v274, 4
          %v276 = vadd.f32 %v274, %v275
          %v277 = vrot.slane %v276, 2
          %v278 = vadd.f32 %v276, %v277
          %v279 = vrot.slane %v278, 1
          %v280 = vadd.f32 %v278, %v279
          %s281 = vtos %v280
          %s282 = scalar_lea.smem [#allocation6], 3
          %283 = sst [smem:[%s282]] %s281
        $region36: #{contra_hybrid_loss_forward.4} parent=27 // pred_fallthru
          _
        // Predicated region
        $region37: #{contra_hybrid_loss_forward.4} parent=27 // pred_check
          %p284 = pneg %p95
        $region38: #{contra_hybrid_loss_forward.4} parent=27 // pred_check_branch
          %286 = sbr.rel (%p284) target = $region40
        $region39: #{contra_hybrid_loss_forward.4} parent=27 // pred_region
          %s288 = ssub.s32 16, 16
          %289 = vsyncadd [#allocation7], %s288
          %s291 = sshll.u32 %s2, 4
          %s292 = int_to_ptr.vmem [resolvable:$true] %s291
          %294 = dma.smem_to_vmem [#allocation6], 16, %s292, [#allocation7]
        $region40: #{contra_hybrid_loss_forward.4} parent=27 // pred_fallthru
          _
        // Predicated region
        $region41: #{contra_hybrid_loss_forward.4} parent=27 // pred_check
          %p295 = pneg %p95
        $region42: #{contra_hybrid_loss_forward.4} parent=27 // pred_check_branch
          %297 = sbr.rel (%p295) target = $region44
        $region43: #{contra_hybrid_loss_forward.4} parent=27 // pred_region
          %298 = dma.done [#allocation7], 16
        $region44: #{contra_hybrid_loss_forward.4} parent=27 // pred_fallthru
          _
        %299 = sfence
      $region28: #{contra_hybrid_loss_forward.4} parent=5 // pred_fallthru
        _
      %p300 = scmp.le.s32.totalorder 2, %s9
      // Predicated region
      $region45: #{contra_hybrid_loss_forward.4} parent=5 // pred_check
        %p301 = pneg %p300
      $region46: #{contra_hybrid_loss_forward.4} parent=5 // pred_check_branch
        %303 = sbr.rel (%p301) target = $region48
      $region47: #{contra_hybrid_loss_forward.4} parent=5 // pred_region
        %s304 = ssub.s32 %s9, 2
      $region48: #{contra_hybrid_loss_forward.4} parent=5 // pred_fallthru
        _
    $region6: #{contra_hybrid_loss_forward.4} parent=1 // loop_footer
      %s13 = sadd.s32 1, %s9
    $region7: #{contra_hybrid_loss_forward.4} parent=1 // loop_footer_branch
      %8 = sbr.rel target = $region3
    $region8: #{contra_hybrid_loss_forward.4} parent=1 // loop_exit
      _
    %305 = vsyncpa [#allocation7], 1
    %s306 = scalar_lea.sflag [#allocation7], 1
    %307 = vsyncpa %s306, 1

// kernel: contra_hybrid_loss_forward.3
$region0: #{contra_hybrid_loss_forward.3}
  #allocation0 [shape = 'u32[]', space=smem, size = 0x4, offset = 0x4, fixed_abs, tag = 'smem constant byte address 0x4 - core index']
  #allocation1 [shape = 'u32[144,128]{1,0:T(1,128)}', space=vmem, size = 0x12000, scoped, tag = 'internal scratch']
  #allocation2 [shape = 'f32[16,16]{1,0:T(8,128)}', space=vmem, size = 0x2000, scoped, tag = 'scratch operand']
  #allocation3 [shape = 'f32[16,16]{1,0:T(8,128)}', space=vmem, size = 0x2000, scoped, tag = 'scratch operand']
  #allocation4 [shape = 'f32[16,16]{1,0:T(8,128)}', space=vmem, size = 0x2000, scoped, tag = 'scratch operand']
  #allocation5 [shape = 'f32[16,16]{1,0:T(8,128)}', space=vmem, size = 0x2000, scoped, tag = 'scratch operand']
  %s0 = inlined_call_operand.vmem [shape: f32[2,2,16,16], index: 0, kind: input, shape index: {}]
  %s1 = inlined_call_operand.vmem [shape: bf16[2,16,16], index: 1, kind: input, shape index: {}]
  %s2 = inlined_call_operand.vmem [shape: f32[4], index: 2, kind: output, shape index: {}]
  %s3 = sld [smem:[#allocation0]]
  $region49: #{contra_hybrid_loss_forward.3} parent=0
    _
  %s5 = ssub.s32 1, %s3
  %s6 = scalar_select 0, %s5, %s3
  $region1: #{contra_hybrid_loss_forward.3} parent=0
    #allocation6 [shape = 'u8[512]{0}', space=smem, size = 0x200, scoped, tag = 'output window, operand 0, single buffered']
    #allocation7 [shape = 's32[2]{0}', space=sflag, size = 0x8, scoped, tag = 'scoped memory for contra_hybrid_loss_forward.3']
    %7 = vsyncpa [#allocation7], 0
    loop: start=0, step=1, limit=4
    $region2: #{contra_hybrid_loss_forward.3} parent=1 // loop_pre_header
      _
    $region3: #{contra_hybrid_loss_forward.3} parent=1 // loop_header
      %s9 = sphi 0, %s13
      %p10 = scmp.ge.s32.totalorder %s9, 4
      %s16 = sphi 0, %s28
      %s17 = sphi 0, %s24
      %s18 = sphi 0, %s16
      %s19 = sphi 0, %s17
      %s20 = sphi 0, %s18
      %s21 = sphi 0, %s19
      %s33 = sphi 0, %s35
      %s36 = sphi 0, %s33
      %s37 = sphi 0, %s36
      %s53 = sphi 0, %s37
      %s61 = sphi 0, %s63
      %s64 = sphi 0, %s61
      %s65 = sphi 0, %s64
      %s81 = sphi 0, %s65
      %s85 = sphi 0, %s85
      %s87 = sphi 0, %s85
      %s88 = sphi 0, %s87
      %s102 = sphi 0, %s88
    $region4: #{contra_hybrid_loss_forward.3} parent=1 // loop_header_branch
      %12 = sbr.rel (%p10) target = $region8
    $region5: #{contra_hybrid_loss_forward.3} parent=1 // loop_body
      %s14 = ssub.s32 %s9, 1
      %s15 = ssub.s32 %s9, 2
      %s22 = sadd.s32 1, %s17
      %p23 = scmp.ge.s32.totalorder %s22, 1
      %s24 = scalar_select %p23, 0, %s22
      %s25 = sadd.s32 1, %s16
      %s26 = scalar_select %p23, %s25, %s16
      %p27 = scmp.ge.s32.totalorder %s26, 2
      %s28 = scalar_select %p27, 0, %s26
      %s29 = ssub.s32 %s16, %s28
      %s30 = ssub.s32 %s17, %s24
      %s31 = sor.u32 %s29, %s30
      %p32 = scmp.eq.s32.totalorder %s31, 0
      %s34 = sadd.s32 %s33, 1
      %s35 = scalar_select %p32, %s33, %s34
      %p38 = pneg %p32
      %p39 = scmp.eq.s32.totalorder %s9, 1
      %p40 = por %p38, %p39
      %p41 = scmp.ne.s32.totalorder %s33, %s36
      %p42 = scmp.eq.s32.totalorder %s9, 0
      %p43 = por %p41, %p42
      %p44 = scmp.ne.s32.totalorder %s33, %s36
      %p45 = scmp.eq.s32.totalorder %s14, 1
      %p46 = por %p44, %p45
      %p47 = scmp.ne.s32.totalorder %s36, %s37
      %p48 = scmp.eq.s32.totalorder %s14, 0
      %p49 = por %p47, %p48
      %p50 = scmp.ne.s32.totalorder %s36, %s37
      %p51 = scmp.eq.s32.totalorder %s15, 1
      %p52 = por %p50, %p51
      %p54 = scmp.ne.s32.totalorder %s37, %s53
      %p55 = scmp.eq.s32.totalorder %s15, 0
      %p56 = por %p54, %p55
      %s57 = ssub.s32 %s16, %s28
      %s58 = ssub.s32 %s17, %s24
      %s59 = sor.u32 %s57, %s58
      %p60 = scmp.eq.s32.totalorder %s59, 0
      %s62 = sadd.s32 %s61, 1
      %s63 = scalar_select %p60, %s61, %s62
      %p66 = pneg %p60
      %p67 = scmp.eq.s32.totalorder %s9, 1
      %p68 = por %p66, %p67
      %p69 = scmp.ne.s32.totalorder %s61, %s64
      %p70 = scmp.eq.s32.totalorder %s9, 0
      %p71 = por %p69, %p70
      %p72 = scmp.ne.s32.totalorder %s61, %s64
      %p73 = scmp.eq.s32.totalorder %s14, 1
      %p74 = por %p72, %p73
      %p75 = scmp.ne.s32.totalorder %s64, %s65
      %p76 = scmp.eq.s32.totalorder %s14, 0
      %p77 = por %p75, %p76
      %p78 = scmp.ne.s32.totalorder %s64, %s65
      %p79 = scmp.eq.s32.totalorder %s15, 1
      %p80 = por %p78, %p79
      %p82 = scmp.ne.s32.totalorder %s65, %s81
      %p83 = scmp.eq.s32.totalorder %s15, 0
      %p84 = por %p82, %p83
      %s86 = sadd.s32 %s85, 1
      %p89 = scmp.eq.s32.totalorder %s9, 1
      %p90 = scmp.ne.s32.totalorder %s85, %s87
      %p91 = scmp.eq.s32.totalorder %s9, 0
      %p92 = por %p90, %p91
      %p93 = scmp.ne.s32.totalorder %s85, %s87
      %p94 = scmp.eq.s32.totalorder %s14, 1
      %p95 = por %p93, %p94
      %p96 = scmp.ne.s32.totalorder %s87, %s88
      %p97 = scmp.eq.s32.totalorder %s14, 0
      %p98 = por %p96, %p97
      %p99 = scmp.ne.s32.totalorder %s87, %s88
      %p100 = scmp.eq.s32.totalorder %s15, 1
      %p101 = por %p99, %p100
      %p103 = scmp.ne.s32.totalorder %s88, %s102
      %p104 = scmp.eq.s32.totalorder %s15, 0
      %p105 = por %p103, %p104
      %p106 = scmp.le.s32.totalorder 1, %s9
      %p107 = scmp.lt.s32.totalorder %s9, 3
      %p108 = pnand %p106, %p107
      %p109 = pneg %p108
      // Predicated region
      $region9: #{contra_hybrid_loss_forward.3} parent=5 // pred_check
        _
      $region10: #{contra_hybrid_loss_forward.3} parent=5 // pred_check_branch
        %111 = sbr.rel (%p108) target = $region12
      $region11: #{contra_hybrid_loss_forward.3} parent=5 // pred_region
        %s112 = ssub.s32 %s9, 1
      $region12: #{contra_hybrid_loss_forward.3} parent=5 // pred_fallthru
        _
      %p113 = scmp.lt.s32.totalorder %s9, 2
      // Predicated region
      $region13: #{contra_hybrid_loss_forward.3} parent=5 // pred_check
        %p114 = pneg %p113
      $region14: #{contra_hybrid_loss_forward.3} parent=5 // pred_check_branch
        %116 = sbr.rel (%p114) target = $region16
      $region15: #{contra_hybrid_loss_forward.3} parent=5 // pred_region
        // Predicated region
        $region17: #{contra_hybrid_loss_forward.3} parent=15 // pred_check
          %p117 = pneg %p43
        $region18: #{contra_hybrid_loss_forward.3} parent=15 // pred_check_branch
          %119 = sbr.rel (%p117) target = $region20
        $region19: #{contra_hybrid_loss_forward.3} parent=15 // pred_region
          %s120 = smul.u32 2, %s17
          %p121 = scmp.lt.s32.totalorder %s16, 1
          %s122 = scalar_select %p121, %s16, 1
          %p123 = scmp.lt.s32.totalorder %s120, 1
          %s124 = scalar_select %p123, %s120, 1
          %s125 = smul.addr %s122, 4
          %s126 = sadd.s32 %s124, %s125
          %s127 = smul.addr %s126, 8
          %s128 = scalar_lea.vmem %s0, %s127
          %s129 = smul.u32 2, %s17
        $region20: #{contra_hybrid_loss_forward.3} parent=15 // pred_fallthru
          _
        // Predicated region
        $region21: #{contra_hybrid_loss_forward.3} parent=15 // pred_check
          %p130 = pneg %p71
        $region22: #{contra_hybrid_loss_forward.3} parent=15 // pred_check_branch
          %132 = sbr.rel (%p130) target = $region24
        $region23: #{contra_hybrid_loss_forward.3} parent=15 // pred_region
          %s133 = smul.u32 2, %s17
          %p134 = scmp.lt.s32.totalorder %s16, 1
          %s135 = scalar_select %p134, %s16, 1
          %p136 = scmp.lt.s32.totalorder %s133, 1
          %s137 = scalar_select %p136, %s133, 1
          %s138 = smul.addr %s135, 2
          %s139 = sadd.s32 %s137, %s138
          %s140 = smul.addr %s139, 4
          %s141 = scalar_lea.vmem %s1, %s140
          %s142 = smul.u32 2, %s17
        $region24: #{contra_hybrid_loss_forward.3} parent=15 // pred_fallthru
          _
      $region16: #{contra_hybrid_loss_forward.3} parent=5 // pred_fallthru
        _
      %p143 = scmp.le.s32.totalorder 1, %s9
      %p144 = scmp.lt.s32.totalorder %s9, 3
      %p145 = pnand %p143, %p144
      %p146 = pneg %p145
      // Predicated region
      $region25: #{contra_hybrid_loss_forward.3} parent=5 // pred_check
        _
      $region26: #{contra_hybrid_loss_forward.3} parent=5 // pred_check_branch
        %148 = sbr.rel (%p145) target = $region28
      $region27: #{contra_hybrid_loss_forward.3} parent=5 // pred_region
        %s149 = ssub.s32 %s9, 1
        %s150 = smul.u32 2, %s19
        %p151 = scmp.lt.s32.totalorder %s18, 1
        %s152 = scalar_select %p151, %s18, 1
        %p153 = scmp.lt.s32.totalorder %s150, 1
        %s154 = scalar_select %p153, %s150, 1
        %s155 = smul.addr %s152, 4
        %s156 = sadd.s32 %s154, %s155
        %s157 = smul.addr %s156, 8
        %s158 = scalar_lea.vmem %s0, %s157
        %p159 = pneg %p49
        %p160 = pneg %p46
        %s161 = smul.u32 2, %s19
        %p162 = scmp.lt.s32.totalorder %s18, 1
        %s163 = scalar_select %p162, %s18, 1
        %p164 = scmp.lt.s32.totalorder %s161, 1
        %s165 = scalar_select %p164, %s161, 1
        %s166 = smul.addr %s163, 2
        %s167 = sadd.s32 %s165, %s166
        %s168 = smul.addr %s167, 4
        %s169 = scalar_lea.vmem %s1, %s168
        %p170 = pneg %p77
        %p171 = pneg %p74
        %p172 = pneg %p98
        %p173 = pneg %p95
        %s174 = smul.u32 2, %s19
        %p175 = scmp.lt.s32.totalorder %s18, 1
        %s176 = scalar_select %p175, %s18, 1
        %p177 = scmp.lt.s32.totalorder %s174, 1
        %s178 = scalar_select %p177, %s174, 1
        %s179 = smul.addr %s176, 4
        %s180 = sadd.s32 %s178, %s179
        %s181 = smul.addr %s180, 8
        %s182 = scalar_lea.vmem %s0, %s181
        %s183 = smul.u32 2, %s19
        %s184 = smul.u32 2, %s19
        %p185 = scmp.lt.s32.totalorder %s18, 1
        %s186 = scalar_select %p185, %s18, 1
        %p187 = scmp.lt.s32.totalorder %s184, 1
        %s188 = scalar_select %p187, %s184, 1
        %s189 = smul.addr %s186, 2
        %s190 = sadd.s32 %s188, %s189
        %s191 = smul.addr %s190, 4
        %s192 = scalar_lea.vmem %s1, %s191
        %s193 = smul.u32 2, %s19
        %p194 = scmp.eq.s32.totalorder %s18, 0
        %p195 = scmp.eq.s32.totalorder %s19, 0
        %p196 = pnand %p194, %p195
        %p197 = pneg %p196
        %p198 = scmp.eq.s32.totalorder %s18, 1
        %p199 = pnand %p198, %p195
        %p200 = pneg %p199
        // Predicated region
        $region29: #{contra_hybrid_loss_forward.3} parent=27 // pred_check
          _
        $region30: #{contra_hybrid_loss_forward.3} parent=27 // pred_check_branch
          %202 = sbr.rel (%p196) target = $region32
        $region31: #{contra_hybrid_loss_forward.3} parent=27 // pred_region
          %vm203 = vcmask 130048
          %204 = vst.msk [vmem:[#allocation2] sm:$0xff] %vm203, 0.0
          %205 = vst.msk [vmem:[#allocation2 + $0x8] sm:$0xff] %vm203, 0.0
          %206 = vst.msk [vmem:[#allocation3] sm:$0xff] %vm203, 0.0
          %207 = vst.msk [vmem:[#allocation3 + $0x8] sm:$0xff] %vm203, 0.0
          %208 = vst.msk [vmem:[#allocation4] sm:$0xff] %vm203, 0.0
          %209 = vst.msk [vmem:[#allocation4 + $0x8] sm:$0xff] %vm203, 0.0
          %210 = vst.msk [vmem:[#allocation5] sm:$0xff] %vm203, 0.0
          %211 = vst.msk [vmem:[#allocation5 + $0x8] sm:$0xff] %vm203, 0.0
        $region32: #{contra_hybrid_loss_forward.3} parent=27 // pred_fallthru
          _
        %v212 = vld [vmem:[%s182] sm:$0xff]
        %v213 = vld [vmem:[%s182 + $0x8] sm:$0xff]
        %s214 = scalar_lea.vmem %s182, 16
        %v215 = vld [vmem:[%s214] sm:$0xff]
        %v216 = vld [vmem:[%s214 + $0x8] sm:$0xff]
        %v217 = vld [vmem:[%s192] sm:$0xf]
        %v218 = vld [vmem:[%s192 + $0x4] sm:$0xf]
        %v219 = vunpack.c.l.bf16 %v217
        %v220 = vunpack.c.l.bf16 %v218
        %v221 = vsub.f32 %v215, %v212
        %v222 = vsub.f32 %v216, %v213
        %v223 = vand.u32 2147483647, %v221
        %v224 = vand.u32 2147483647, %v222
        %v225 = vsub.f32 0.0, %v223
        %v226 = vsub.f32 0.0, %v224
        %v227 = vmul.f32 %v225, 1.442695
        %v228 = vpow.pop %v227
        %v229 = vmul.f32 %v226, 1.442695
        %v230 = vpow.pop %v229
        %v231 = vmax.f32 %v221, 0.0
        %v232 = vmax.f32 %v222, 0.0
        %v233 = vadd.f32 %v228, 1.0
        %v234 = vadd.f32 %v230, 1.0
        %v235 = vlog2.pop %v233
        %v236 = vmul.f32 %v235, 0.6931472
        %v237 = vlog2.pop %v234
        %v238 = vmul.f32 %v237, 0.6931472
        %v239 = vadd.f32 %v231, %v236
        %v240 = vadd.f32 %v232, %v238
        %v241 = vmul.f32 %v219, %v221
        %v242 = vmul.f32 %v220, %v222
        %v243 = vsub.f32 %v239, %v241
        %v244 = vsub.f32 %v240, %v242
        %v245 = vrcp.pop %v233
        %v246 = vrcp.pop %v234
        %vm247 = vcmp.ge.f32.partialorder %v221, 0.0
        %vm248 = vcmp.ge.f32.partialorder %v222, 0.0
        %v249 = vmul.f32 %v228, %v245
        %v250 = vmul.f32 %v230, %v246
        %v251 = vsel %vm247, %v245, %v249
        %v252 = vsel %vm248, %v246, %v250
        %v253 = vld [vmem:[#allocation2] sm:$0xff]
        %v254 = vld [vmem:[#allocation2 + $0x8] sm:$0xff]
        %v255 = vadd.f32 %v253, %v243
        %v256 = vadd.f32 %v254, %v244
        %vm257 = vcmask 130048
        %258 = vst.msk [vmem:[#allocation2] sm:$0xff] %vm257, %v255
        %259 = vst.msk [vmem:[#allocation2 + $0x8] sm:$0xff] %vm257, %v256
        %v260 = vld [vmem:[#allocation3] sm:$0xff]
        %v261 = vld [vmem:[#allocation3 + $0x8] sm:$0xff]
        %v262 = vmul.f32 %v251, %v219
        %v263 = vmul.f32 %v252, %v220
        %v264 = vadd.f32 %v260, %v262
        %v265 = vadd.f32 %v261, %v263
        %266 = vst.msk [vmem:[#allocation3] sm:$0xff] %vm257, %v264
        %267 = vst.msk [vmem:[#allocation3 + $0x8] sm:$0xff] %vm257, %v265
        %v268 = vld [vmem:[#allocation4] sm:$0xff]
        %v269 = vld [vmem:[#allocation4 + $0x8] sm:$0xff]
        %v270 = vadd.f32 %v268, %v251
        %v271 = vadd.f32 %v269, %v252
        %272 = vst.msk [vmem:[#allocation4] sm:$0xff] %vm257, %v270
        %273 = vst.msk [vmem:[#allocation4 + $0x8] sm:$0xff] %vm257, %v271
        %v274 = vld [vmem:[#allocation5] sm:$0xff]
        %v275 = vld [vmem:[#allocation5 + $0x8] sm:$0xff]
        %v276 = vadd.f32 %v274, %v219
        %v277 = vadd.f32 %v275, %v220
        %278 = vst.msk [vmem:[#allocation5] sm:$0xff] %vm257, %v276
        %279 = vst.msk [vmem:[#allocation5 + $0x8] sm:$0xff] %vm257, %v277
        // Predicated region
        $region33: #{contra_hybrid_loss_forward.3} parent=27 // pred_check
          _
        $region34: #{contra_hybrid_loss_forward.3} parent=27 // pred_check_branch
          %281 = sbr.rel (%p199) target = $region36
        $region35: #{contra_hybrid_loss_forward.3} parent=27 // pred_region
          %v282 = vld [vmem:[#allocation2] sm:$0xff]
          %v283 = vld [vmem:[#allocation2 + $0x8] sm:$0xff]
          %v284 = vsel %vm257, %v282, 0.0
          %v285 = vsel %vm257, %v283, 0.0
          %v286 = vadd.f32 %v284, %v285
          %287 = vadd.xlane.f32.xlu0 %v286
          %v288 = vpop.xlane.xlu0 %287
          %v289 = vrot.slane %v288, 4
          %v290 = vadd.f32 %v288, %v289
          %v291 = vrot.slane %v290, 2
          %v292 = vadd.f32 %v290, %v291
          %v293 = vrot.slane %v292, 1
          %v294 = vadd.f32 %v292, %v293
          %s295 = vtos %v294
          %s296 = scalar_lea.smem [#allocation6], 0
          %297 = sst [smem:[%s296]] %s295
          %v298 = vld [vmem:[#allocation3] sm:$0xff]
          %v299 = vld [vmem:[#allocation3 + $0x8] sm:$0xff]
          %v300 = vsel %vm257, %v298, 0.0
          %v301 = vsel %vm257, %v299, 0.0
          %v302 = vadd.f32 %v300, %v301
          %303 = vadd.xlane.f32.xlu0 %v302
          %v304 = vpop.xlane.xlu0 %303
          %v305 = vrot.slane %v304, 4
          %v306 = vadd.f32 %v304, %v305
          %v307 = vrot.slane %v306, 2
          %v308 = vadd.f32 %v306, %v307
          %v309 = vrot.slane %v308, 1
          %v310 = vadd.f32 %v308, %v309
          %s311 = vtos %v310
          %s312 = scalar_lea.smem [#allocation6], 1
          %313 = sst [smem:[%s312]] %s311
          %v314 = vld [vmem:[#allocation4] sm:$0xff]
          %v315 = vld [vmem:[#allocation4 + $0x8] sm:$0xff]
          %v316 = vsel %vm257, %v314, 0.0
          %v317 = vsel %vm257, %v315, 0.0
          %v318 = vadd.f32 %v316, %v317
          %319 = vadd.xlane.f32.xlu0 %v318
          %v320 = vpop.xlane.xlu0 %319
          %v321 = vrot.slane %v320, 4
          %v322 = vadd.f32 %v320, %v321
          %v323 = vrot.slane %v322, 2
          %v324 = vadd.f32 %v322, %v323
          %v325 = vrot.slane %v324, 1
          %v326 = vadd.f32 %v324, %v325
          %s327 = vtos %v326
          %s328 = scalar_lea.smem [#allocation6], 2
          %329 = sst [smem:[%s328]] %s327
          %v330 = vld [vmem:[#allocation5] sm:$0xff]
          %v331 = vld [vmem:[#allocation5 + $0x8] sm:$0xff]
          %v332 = vsel %vm257, %v330, 0.0
          %v333 = vsel %vm257, %v331, 0.0
          %v334 = vadd.f32 %v332, %v333
          %335 = vadd.xlane.f32.xlu0 %v334
          %v336 = vpop.xlane.xlu0 %335
          %v337 = vrot.slane %v336, 4
          %v338 = vadd.f32 %v336, %v337
          %v339 = vrot.slane %v338, 2
          %v340 = vadd.f32 %v338, %v339
          %v341 = vrot.slane %v340, 1
          %v342 = vadd.f32 %v340, %v341
          %s343 = vtos %v342
          %s344 = scalar_lea.smem [#allocation6], 3
          %345 = sst [smem:[%s344]] %s343
        $region36: #{contra_hybrid_loss_forward.3} parent=27 // pred_fallthru
          _
        // Predicated region
        $region37: #{contra_hybrid_loss_forward.3} parent=27 // pred_check
          %p346 = pneg %p95
        $region38: #{contra_hybrid_loss_forward.3} parent=27 // pred_check_branch
          %348 = sbr.rel (%p346) target = $region40
        $region39: #{contra_hybrid_loss_forward.3} parent=27 // pred_region
          %s350 = ssub.s32 16, 16
          %351 = vsyncadd [#allocation7], %s350
          %s353 = sshll.u32 %s2, 4
          %s354 = int_to_ptr.vmem [resolvable:$true] %s353
          %356 = dma.smem_to_vmem [#allocation6], 16, %s354, [#allocation7]
        $region40: #{contra_hybrid_loss_forward.3} parent=27 // pred_fallthru
          _
        // Predicated region
        $region41: #{contra_hybrid_loss_forward.3} parent=27 // pred_check
          %p357 = pneg %p95
        $region42: #{contra_hybrid_loss_forward.3} parent=27 // pred_check_branch
          %359 = sbr.rel (%p357) target = $region44
        $region43: #{contra_hybrid_loss_forward.3} parent=27 // pred_region
          %360 = dma.done [#allocation7], 16
        $region44: #{contra_hybrid_loss_forward.3} parent=27 // pred_fallthru
          _
        %361 = sfence
      $region28: #{contra_hybrid_loss_forward.3} parent=5 // pred_fallthru
        _
      %p362 = scmp.le.s32.totalorder 2, %s9
      // Predicated region
      $region45: #{contra_hybrid_loss_forward.3} parent=5 // pred_check
        %p363 = pneg %p362
      $region46: #{contra_hybrid_loss_forward.3} parent=5 // pred_check_branch
        %365 = sbr.rel (%p363) target = $region48
      $region47: #{contra_hybrid_loss_forward.3} parent=5 // pred_region
        %s366 = ssub.s32 %s9, 2
      $region48: #{contra_hybrid_loss_forward.3} parent=5 // pred_fallthru
        _
    $region6: #{contra_hybrid_loss_forward.3} parent=1 // loop_footer
      %s13 = sadd.s32 1, %s9
    $region7: #{contra_hybrid_loss_forward.3} parent=1 // loop_footer_branch
      %8 = sbr.rel target = $region3
    $region8: #{contra_hybrid_loss_forward.3} parent=1 // loop_exit
      _
    %367 = vsyncpa [#allocation7], 1
    %s368 = scalar_lea.sflag [#allocation7], 1
    %369 = vsyncpa %s368, 1

// kernel: contra_hybrid_loss_forward.5
$region0: #{contra_hybrid_loss_forward.5}
  #allocation0 [shape = 'u32[]', space=smem, size = 0x4, offset = 0x4, fixed_abs, tag = 'smem constant byte address 0x4 - core index']
  #allocation1 [shape = 'u32[144,128]{1,0:T(1,128)}', space=vmem, size = 0x12000, scoped, tag = 'internal scratch']
  #allocation2 [shape = 'f32[4,4]{1,0:T(4,128)}', space=vmem, size = 0x800, scoped, tag = 'scratch operand']
  #allocation3 [shape = 'f32[4,4]{1,0:T(4,128)}', space=vmem, size = 0x800, scoped, tag = 'scratch operand']
  #allocation4 [shape = 'f32[4,4]{1,0:T(4,128)}', space=vmem, size = 0x800, scoped, tag = 'scratch operand']
  #allocation5 [shape = 'f32[4,4]{1,0:T(4,128)}', space=vmem, size = 0x800, scoped, tag = 'scratch operand']
  %s0 = inlined_call_operand.vmem [shape: f32[2,2,4,4], index: 0, kind: input, shape index: {}]
  %s1 = inlined_call_operand.vmem [shape: bf16[2,4,4], index: 1, kind: input, shape index: {}]
  %s2 = inlined_call_operand.vmem [shape: f32[4], index: 2, kind: output, shape index: {}]
  %s3 = sld [smem:[#allocation0]]
  $region49: #{contra_hybrid_loss_forward.5} parent=0
    _
  %s5 = ssub.s32 1, %s3
  %s6 = scalar_select 0, %s5, %s3
  $region1: #{contra_hybrid_loss_forward.5} parent=0
    #allocation6 [shape = 'u8[512]{0}', space=smem, size = 0x200, scoped, tag = 'output window, operand 0, single buffered']
    #allocation7 [shape = 's32[2]{0}', space=sflag, size = 0x8, scoped, tag = 'scoped memory for contra_hybrid_loss_forward.5']
    %7 = vsyncpa [#allocation7], 0
    loop: start=0, step=1, limit=4
    $region2: #{contra_hybrid_loss_forward.5} parent=1 // loop_pre_header
      _
    $region3: #{contra_hybrid_loss_forward.5} parent=1 // loop_header
      %s9 = sphi 0, %s13
      %p10 = scmp.ge.s32.totalorder %s9, 4
      %s16 = sphi 0, %s28
      %s17 = sphi 0, %s24
      %s18 = sphi 0, %s16
      %s19 = sphi 0, %s17
      %s20 = sphi 0, %s18
      %s21 = sphi 0, %s19
      %s33 = sphi 0, %s35
      %s36 = sphi 0, %s33
      %s37 = sphi 0, %s36
      %s53 = sphi 0, %s37
      %s61 = sphi 0, %s63
      %s64 = sphi 0, %s61
      %s65 = sphi 0, %s64
      %s81 = sphi 0, %s65
      %s85 = sphi 0, %s85
      %s87 = sphi 0, %s85
      %s88 = sphi 0, %s87
      %s102 = sphi 0, %s88
    $region4: #{contra_hybrid_loss_forward.5} parent=1 // loop_header_branch
      %12 = sbr.rel (%p10) target = $region8
    $region5: #{contra_hybrid_loss_forward.5} parent=1 // loop_body
      %s14 = ssub.s32 %s9, 1
      %s15 = ssub.s32 %s9, 2
      %s22 = sadd.s32 1, %s17
      %p23 = scmp.ge.s32.totalorder %s22, 1
      %s24 = scalar_select %p23, 0, %s22
      %s25 = sadd.s32 1, %s16
      %s26 = scalar_select %p23, %s25, %s16
      %p27 = scmp.ge.s32.totalorder %s26, 2
      %s28 = scalar_select %p27, 0, %s26
      %s29 = ssub.s32 %s16, %s28
      %s30 = ssub.s32 %s17, %s24
      %s31 = sor.u32 %s29, %s30
      %p32 = scmp.eq.s32.totalorder %s31, 0
      %s34 = sadd.s32 %s33, 1
      %s35 = scalar_select %p32, %s33, %s34
      %p38 = pneg %p32
      %p39 = scmp.eq.s32.totalorder %s9, 1
      %p40 = por %p38, %p39
      %p41 = scmp.ne.s32.totalorder %s33, %s36
      %p42 = scmp.eq.s32.totalorder %s9, 0
      %p43 = por %p41, %p42
      %p44 = scmp.ne.s32.totalorder %s33, %s36
      %p45 = scmp.eq.s32.totalorder %s14, 1
      %p46 = por %p44, %p45
      %p47 = scmp.ne.s32.totalorder %s36, %s37
      %p48 = scmp.eq.s32.totalorder %s14, 0
      %p49 = por %p47, %p48
      %p50 = scmp.ne.s32.totalorder %s36, %s37
      %p51 = scmp.eq.s32.totalorder %s15, 1
      %p52 = por %p50, %p51
      %p54 = scmp.ne.s32.totalorder %s37, %s53
      %p55 = scmp.eq.s32.totalorder %s15, 0
      %p56 = por %p54, %p55
      %s57 = ssub.s32 %s16, %s28
      %s58 = ssub.s32 %s17, %s24
      %s59 = sor.u32 %s57, %s58
      %p60 = scmp.eq.s32.totalorder %s59, 0
      %s62 = sadd.s32 %s61, 1
      %s63 = scalar_select %p60, %s61, %s62
      %p66 = pneg %p60
      %p67 = scmp.eq.s32.totalorder %s9, 1
      %p68 = por %p66, %p67
      %p69 = scmp.ne.s32.totalorder %s61, %s64
      %p70 = scmp.eq.s32.totalorder %s9, 0
      %p71 = por %p69, %p70
      %p72 = scmp.ne.s32.totalorder %s61, %s64
      %p73 = scmp.eq.s32.totalorder %s14, 1
      %p74 = por %p72, %p73
      %p75 = scmp.ne.s32.totalorder %s64, %s65
      %p76 = scmp.eq.s32.totalorder %s14, 0
      %p77 = por %p75, %p76
      %p78 = scmp.ne.s32.totalorder %s64, %s65
      %p79 = scmp.eq.s32.totalorder %s15, 1
      %p80 = por %p78, %p79
      %p82 = scmp.ne.s32.totalorder %s65, %s81
      %p83 = scmp.eq.s32.totalorder %s15, 0
      %p84 = por %p82, %p83
      %s86 = sadd.s32 %s85, 1
      %p89 = scmp.eq.s32.totalorder %s9, 1
      %p90 = scmp.ne.s32.totalorder %s85, %s87
      %p91 = scmp.eq.s32.totalorder %s9, 0
      %p92 = por %p90, %p91
      %p93 = scmp.ne.s32.totalorder %s85, %s87
      %p94 = scmp.eq.s32.totalorder %s14, 1
      %p95 = por %p93, %p94
      %p96 = scmp.ne.s32.totalorder %s87, %s88
      %p97 = scmp.eq.s32.totalorder %s14, 0
      %p98 = por %p96, %p97
      %p99 = scmp.ne.s32.totalorder %s87, %s88
      %p100 = scmp.eq.s32.totalorder %s15, 1
      %p101 = por %p99, %p100
      %p103 = scmp.ne.s32.totalorder %s88, %s102
      %p104 = scmp.eq.s32.totalorder %s15, 0
      %p105 = por %p103, %p104
      %p106 = scmp.le.s32.totalorder 1, %s9
      %p107 = scmp.lt.s32.totalorder %s9, 3
      %p108 = pnand %p106, %p107
      %p109 = pneg %p108
      // Predicated region
      $region9: #{contra_hybrid_loss_forward.5} parent=5 // pred_check
        _
      $region10: #{contra_hybrid_loss_forward.5} parent=5 // pred_check_branch
        %111 = sbr.rel (%p108) target = $region12
      $region11: #{contra_hybrid_loss_forward.5} parent=5 // pred_region
        %s112 = ssub.s32 %s9, 1
      $region12: #{contra_hybrid_loss_forward.5} parent=5 // pred_fallthru
        _
      %p113 = scmp.lt.s32.totalorder %s9, 2
      // Predicated region
      $region13: #{contra_hybrid_loss_forward.5} parent=5 // pred_check
        %p114 = pneg %p113
      $region14: #{contra_hybrid_loss_forward.5} parent=5 // pred_check_branch
        %116 = sbr.rel (%p114) target = $region16
      $region15: #{contra_hybrid_loss_forward.5} parent=5 // pred_region
        // Predicated region
        $region17: #{contra_hybrid_loss_forward.5} parent=15 // pred_check
          %p117 = pneg %p43
        $region18: #{contra_hybrid_loss_forward.5} parent=15 // pred_check_branch
          %119 = sbr.rel (%p117) target = $region20
        $region19: #{contra_hybrid_loss_forward.5} parent=15 // pred_region
          %p120 = scmp.lt.s32.totalorder %s16, 1
          %s121 = scalar_select %p120, %s16, 1
          %p122 = scmp.lt.s32.totalorder %s17, 0
          %s123 = scalar_select %p122, %s17, 0
          %s124 = smul.addr %s121, 2
          %s125 = sadd.s32 %s123, %s124
          %s126 = smul.addr %s125, 4
          %s127 = scalar_lea.vmem %s0, %s126
        $region20: #{contra_hybrid_loss_forward.5} parent=15 // pred_fallthru
          _
        // Predicated region
        $region21: #{contra_hybrid_loss_forward.5} parent=15 // pred_check
          %p128 = pneg %p71
        $region22: #{contra_hybrid_loss_forward.5} parent=15 // pred_check_branch
          %130 = sbr.rel (%p128) target = $region24
        $region23: #{contra_hybrid_loss_forward.5} parent=15 // pred_region
          %p131 = scmp.lt.s32.totalorder %s16, 1
          %s132 = scalar_select %p131, %s16, 1
          %p133 = scmp.lt.s32.totalorder %s17, 0
          %s134 = scalar_select %p133, %s17, 0
          %s135 = sadd.s32 %s134, %s132
          %s136 = smul.addr %s135, 2
          %s137 = scalar_lea.vmem %s1, %s136
        $region24: #{contra_hybrid_loss_forward.5} parent=15 // pred_fallthru
          _
      $region16: #{contra_hybrid_loss_forward.5} parent=5 // pred_fallthru
        _
      %p138 = scmp.le.s32.totalorder 1, %s9
      %p139 = scmp.lt.s32.totalorder %s9, 3
      %p140 = pnand %p138, %p139
      %p141 = pneg %p140
      // Predicated region
      $region25: #{contra_hybrid_loss_forward.5} parent=5 // pred_check
        _
      $region26: #{contra_hybrid_loss_forward.5} parent=5 // pred_check_branch
        %143 = sbr.rel (%p140) target = $region28
      $region27: #{contra_hybrid_loss_forward.5} parent=5 // pred_region
        %s144 = ssub.s32 %s9, 1
        %p145 = scmp.lt.s32.totalorder %s18, 1
        %s146 = scalar_select %p145, %s18, 1
        %p147 = scmp.lt.s32.totalorder %s19, 0
        %s148 = scalar_select %p147, %s19, 0
        %s149 = smul.addr %s146, 2
        %s150 = sadd.s32 %s148, %s149
        %s151 = smul.addr %s150, 4
        %s152 = scalar_lea.vmem %s0, %s151
        %p153 = pneg %p49
        %p154 = pneg %p46
        %p155 = scmp.lt.s32.totalorder %s18, 1
        %s156 = scalar_select %p155, %s18, 1
        %p157 = scmp.lt.s32.totalorder %s19, 0
        %s158 = scalar_select %p157, %s19, 0
        %s159 = sadd.s32 %s158, %s156
        %s160 = smul.addr %s159, 2
        %s161 = scalar_lea.vmem %s1, %s160
        %p162 = pneg %p77
        %p163 = pneg %p74
        %p164 = pneg %p98
        %p165 = pneg %p95
        %p166 = scmp.lt.s32.totalorder %s18, 1
        %s167 = scalar_select %p166, %s18, 1
        %p168 = scmp.lt.s32.totalorder %s19, 0
        %s169 = scalar_select %p168, %s19, 0
        %s170 = smul.addr %s167, 2
        %s171 = sadd.s32 %s169, %s170
        %s172 = smul.addr %s171, 4
        %s173 = scalar_lea.vmem %s0, %s172
        %p174 = scmp.lt.s32.totalorder %s18, 1
        %s175 = scalar_select %p174, %s18, 1
        %p176 = scmp.lt.s32.totalorder %s19, 0
        %s177 = scalar_select %p176, %s19, 0
        %s178 = sadd.s32 %s177, %s175
        %s179 = smul.addr %s178, 2
        %s180 = scalar_lea.vmem %s1, %s179
        %p181 = scmp.eq.s32.totalorder %s18, 0
        %p182 = scmp.eq.s32.totalorder %s19, 0
        %p183 = pnand %p181, %p182
        %p184 = pneg %p183
        %p185 = scmp.eq.s32.totalorder %s18, 1
        %p186 = pnand %p185, %p182
        %p187 = pneg %p186
        // Predicated region
        $region29: #{contra_hybrid_loss_forward.5} parent=27 // pred_check
          _
        $region30: #{contra_hybrid_loss_forward.5} parent=27 // pred_check_branch
          %189 = sbr.rel (%p183) target = $region32
        $region31: #{contra_hybrid_loss_forward.5} parent=27 // pred_region
          %vm190 = vcmask 27648
          %191 = vst.msk [vmem:[#allocation2] sm:$0xf] %vm190, 0.0
          %192 = vst.msk [vmem:[#allocation3] sm:$0xf] %vm190, 0.0
          %193 = vst.msk [vmem:[#allocation4] sm:$0xf] %vm190, 0.0
          %194 = vst.msk [vmem:[#allocation5] sm:$0xf] %vm190, 0.0
        $region32: #{contra_hybrid_loss_forward.5} parent=27 // pred_fallthru
          _
        %v195 = vld [vmem:[%s173] sm:$0xf]
        %s196 = scalar_lea.vmem %s173, 4
        %v197 = vld [vmem:[%s196] sm:$0xf]
        %v198 = vld [vmem:[%s180] sm:$0x3]
        %v199 = vunpack.c.l.bf16 %v198
        %v200 = vsub.f32 %v197, %v195
        %v201 = vand.u32 2147483647, %v200
        %v202 = vsub.f32 0.0, %v201
        %v203 = vmul.f32 %v202, 1.442695
        %v204 = vpow.pop %v203
        %v205 = vmax.f32 %v200, 0.0
        %v206 = vadd.f32 %v204, 1.0
        %v207 = vlog2.pop %v206
        %v208 = vmul.f32 %v207, 0.6931472
        %v209 = vadd.f32 %v205, %v208
        %v210 = vmul.f32 %v199, %v200
        %v211 = vsub.f32 %v209, %v210
        %v212 = vrcp.pop %v206
        %vm213 = vcmp.ge.f32.partialorder %v200, 0.0
        %v214 = vmul.f32 %v204, %v212
        %v215 = vsel %vm213, %v212, %v214
        %v216 = vld [vmem:[#allocation2] sm:$0xf]
        %v217 = vadd.f32 %v216, %v211
        %vm218 = vcmask 27648
        %219 = vst.msk [vmem:[#allocation2] sm:$0xf] %vm218, %v217
        %v220 = vld [vmem:[#allocation3] sm:$0xf]
        %v221 = vmul.f32 %v215, %v199
        %v222 = vadd.f32 %v220, %v221
        %223 = vst.msk [vmem:[#allocation3] sm:$0xf] %vm218, %v222
        %v224 = vld [vmem:[#allocation4] sm:$0xf]
        %v225 = vadd.f32 %v224, %v215
        %226 = vst.msk [vmem:[#allocation4] sm:$0xf] %vm218, %v225
        %v227 = vld [vmem:[#allocation5] sm:$0xf]
        %v228 = vadd.f32 %v227, %v199
        %229 = vst.msk [vmem:[#allocation5] sm:$0xf] %vm218, %v228
        // Predicated region
        $region33: #{contra_hybrid_loss_forward.5} parent=27 // pred_check
          _
        $region34: #{contra_hybrid_loss_forward.5} parent=27 // pred_check_branch
          %231 = sbr.rel (%p186) target = $region36
        $region35: #{contra_hybrid_loss_forward.5} parent=27 // pred_region
          %v232 = vld [vmem:[#allocation2] sm:$0xf]
          %v233 = vsel %vm218, %v232, 0.0
          %234 = vadd.xlane.f32.xlu0 %v233
          %v235 = vpop.xlane.xlu0 %234
          %v236 = vrot.slane %v235, 4
          %v237 = vadd.f32 %v235, %v236
          %v238 = vrot.slane %v237, 2
          %v239 = vadd.f32 %v237, %v238
          %v240 = vrot.slane %v239, 1
          %v241 = vadd.f32 %v239, %v240
          %s242 = vtos %v241
          %s243 = scalar_lea.smem [#allocation6], 0
          %244 = sst [smem:[%s243]] %s242
          %v245 = vld [vmem:[#allocation3] sm:$0xf]
          %v246 = vsel %vm218, %v245, 0.0
          %247 = vadd.xlane.f32.xlu0 %v246
          %v248 = vpop.xlane.xlu0 %247
          %v249 = vrot.slane %v248, 4
          %v250 = vadd.f32 %v248, %v249
          %v251 = vrot.slane %v250, 2
          %v252 = vadd.f32 %v250, %v251
          %v253 = vrot.slane %v252, 1
          %v254 = vadd.f32 %v252, %v253
          %s255 = vtos %v254
          %s256 = scalar_lea.smem [#allocation6], 1
          %257 = sst [smem:[%s256]] %s255
          %v258 = vld [vmem:[#allocation4] sm:$0xf]
          %v259 = vsel %vm218, %v258, 0.0
          %260 = vadd.xlane.f32.xlu0 %v259
          %v261 = vpop.xlane.xlu0 %260
          %v262 = vrot.slane %v261, 4
          %v263 = vadd.f32 %v261, %v262
          %v264 = vrot.slane %v263, 2
          %v265 = vadd.f32 %v263, %v264
          %v266 = vrot.slane %v265, 1
          %v267 = vadd.f32 %v265, %v266
          %s268 = vtos %v267
          %s269 = scalar_lea.smem [#allocation6], 2
          %270 = sst [smem:[%s269]] %s268
          %v271 = vld [vmem:[#allocation5] sm:$0xf]
          %v272 = vsel %vm218, %v271, 0.0
          %273 = vadd.xlane.f32.xlu0 %v272
          %v274 = vpop.xlane.xlu0 %273
          %v275 = vrot.slane %v274, 4
          %v276 = vadd.f32 %v274, %v275
          %v277 = vrot.slane %v276, 2
          %v278 = vadd.f32 %v276, %v277
          %v279 = vrot.slane %v278, 1
          %v280 = vadd.f32 %v278, %v279
          %s281 = vtos %v280
          %s282 = scalar_lea.smem [#allocation6], 3
          %283 = sst [smem:[%s282]] %s281
        $region36: #{contra_hybrid_loss_forward.5} parent=27 // pred_fallthru
          _
        // Predicated region
        $region37: #{contra_hybrid_loss_forward.5} parent=27 // pred_check
          %p284 = pneg %p95
        $region38: #{contra_hybrid_loss_forward.5} parent=27 // pred_check_branch
          %286 = sbr.rel (%p284) target = $region40
        $region39: #{contra_hybrid_loss_forward.5} parent=27 // pred_region
          %s288 = ssub.s32 16, 16
          %289 = vsyncadd [#allocation7], %s288
          %s291 = sshll.u32 %s2, 4
          %s292 = int_to_ptr.vmem [resolvable:$true] %s291
          %294 = dma.smem_to_vmem [#allocation6], 16, %s292, [#allocation7]
        $region40: #{contra_hybrid_loss_forward.5} parent=27 // pred_fallthru
          _
        // Predicated region
        $region41: #{contra_hybrid_loss_forward.5} parent=27 // pred_check
          %p295 = pneg %p95
        $region42: #{contra_hybrid_loss_forward.5} parent=27 // pred_check_branch
          %297 = sbr.rel (%p295) target = $region44
        $region43: #{contra_hybrid_loss_forward.5} parent=27 // pred_region
          %298 = dma.done [#allocation7], 16
        $region44: #{contra_hybrid_loss_forward.5} parent=27 // pred_fallthru
          _
        %299 = sfence
      $region28: #{contra_hybrid_loss_forward.5} parent=5 // pred_fallthru
        _
      %p300 = scmp.le.s32.totalorder 2, %s9
      // Predicated region
      $region45: #{contra_hybrid_loss_forward.5} parent=5 // pred_check
        %p301 = pneg %p300
      $region46: #{contra_hybrid_loss_forward.5} parent=5 // pred_check_branch
        %303 = sbr.rel (%p301) target = $region48
      $region47: #{contra_hybrid_loss_forward.5} parent=5 // pred_region
        %s304 = ssub.s32 %s9, 2
      $region48: #{contra_hybrid_loss_forward.5} parent=5 // pred_fallthru
        _
    $region6: #{contra_hybrid_loss_forward.5} parent=1 // loop_footer
      %s13 = sadd.s32 1, %s9
    $region7: #{contra_hybrid_loss_forward.5} parent=1 // loop_footer_branch
      %8 = sbr.rel target = $region3
    $region8: #{contra_hybrid_loss_forward.5} parent=1 // loop_exit
      _
    %305 = vsyncpa [#allocation7], 1
    %s306 = scalar_lea.sflag [#allocation7], 1
    %307 = vsyncpa %s306, 1

</llo_original>
